<compile_context>
chip_gen: v5e
topology: v5e:2x2
jax: 0.10.0
libtpu: 0.0.40
codegen_flags: <defaults>
</compile_context>

<pallas_src>
import functools

import jax
import jax.numpy as jnp
from jax import lax
from jax.experimental import pallas as pl
from jax.experimental.pallas import tpu as pltpu


# ----------------------------- helpers -------------------------------------


def _round_up(n, m):
    return ((n + m - 1) // m) * m


def _pad_axis_to(x, axis, target):
    """Zero-pad axis `axis` of x up to size `target`."""
    size = x.shape[axis]
    if size == target:
        return x
    widths = [(0, 0)] * x.ndim
    widths[axis] = (0, target - size)
    return jnp.pad(x, widths)


def _pad_gate_rows(w, H, Hp):
    """w: (4H, ...) stacked gate blocks [i,f,g,o] -> (4Hp, ...) zero-padded per gate."""
    g = w.reshape((4, H) + w.shape[1:])
    widths = [(0, 0)] * g.ndim
    widths[1] = (0, Hp - H)
    g = jnp.pad(g, widths)
    return g.reshape((4 * Hp,) + w.shape[1:])


# ----------------------------- kernels -------------------------------------


def _lstm_chunk_kernel(pg_ref, whh_ref, hs_ref, h_ref, c_ref, *, hidden_size, chunk):
    """One grid step = `chunk` LSTM time steps.

    pg_ref  : (Tc, B, 4H)  precomputed x@W_ih^T + b for this chunk
    whh_ref : (H, 4H)      hidden->gates weights (pre-transposed)
    hs_ref  : (Tc, B, H)   per-step hidden states (output)
    h_ref   : (B, H)       VMEM scratch, persists across grid steps
    c_ref   : (B, H)       VMEM scratch, persists across grid steps
    """
    s = pl.program_id(0)

    @pl.when(s == 0)
    def _():
        h_ref[...] = jnp.zeros_like(h_ref)
        c_ref[...] = jnp.zeros_like(c_ref)

    H = hidden_size
    whh = whh_ref[...]                                   # hoisted load, (H, 4H)

    def step(t, carry):
        h, c = carry
        gates = pg_ref[t] + jnp.dot(h, whh, preferred_element_type=jnp.float32)
        # PyTorch LSTM gate ordering: i, f, g, o  (lane-aligned slices, H % 128 == 0)
        i_g = jax.nn.sigmoid(gates[:, 0 * H:1 * H])
        f_g = jax.nn.sigmoid(gates[:, 1 * H:2 * H])
        g_g = jnp.tanh(gates[:, 2 * H:3 * H])
        o_g = jax.nn.sigmoid(gates[:, 3 * H:4 * H])
        c_new = f_g * c + i_g * g_g
        h_new = o_g * jnp.tanh(c_new)
        hs_ref[t] = h_new
        return h_new, c_new

    h_fin, c_fin = lax.fori_loop(0, chunk, step, (h_ref[...], c_ref[...]),
                                 unroll=True)
    h_ref[...] = h_fin
    c_ref[...] = c_fin


def _fc_kernel(h_ref, w_ref, b_ref, o_ref):
    """Tiled batched projection: (tm, H) x (H, tn) + (1, tn)."""
    o_ref[...] = (jnp.dot(h_ref[...], w_ref[...], preferred_element_type=jnp.float32)
                  + b_ref[...])


# ----------------------------- forward -------------------------------------


def decoder_rnn_forward(features, captions, params, *, time_chunk=8):
    """Replicates DecoderRNN.forward.

    features : (B, E) float32
    captions : (B, Tcap) int32
    returns  : (B, Tcap, V) float32  (T == Tcap because of [:, :-1] + concat)
    """
    emb_table = params["emb"]            # (V, E)
    w_ih = params["w_ih"]                # (4H, E)
    w_hh = params["w_hh"]                # (4H, H)
    b_ih = params["b_ih"]                # (4H,)
    b_hh = params["b_hh"]                # (4H,)
    w_fc = params["w_fc"]                # (V, H)
    b_fc = params["b_fc"]                # (V,)

    B, E = features.shape
    V, H = w_fc.shape

    Hp = _round_up(H, 128)
    Vp = _round_up(V, 128)
    Bp = _round_up(B, 8)

    # --- plain-JAX glue: embedding lookup + concat image feature at t=0 ---
    caps = captions[:, :-1]                                   # (B, Tcap-1)
    embedded = jnp.take(emb_table, caps, axis=0)              # (B, Tcap-1, E)
    inputs = jnp.concatenate([features[:, None, :], embedded],
                             axis=1).astype(jnp.float32)      # (B, T, E)
    T = inputs.shape[1]

    inputs = _pad_axis_to(inputs, 0, Bp)                      # (Bp, T, E)
    x_tm = jnp.transpose(inputs, (1, 0, 2))                   # (T, Bp, E)

    # --- gate-padded weights (each gate block padded H -> Hp with zeros) ---
    w_ih_p = _pad_gate_rows(w_ih.astype(jnp.float32), H, Hp)          # (4Hp, E)
    w_hh_p = _pad_gate_rows(w_hh.astype(jnp.float32), H, Hp)          # (4Hp, H)
    w_hh_p = _pad_axis_to(w_hh_p, 1, Hp)                              # (4Hp, Hp)
    b_p = _pad_gate_rows((b_ih + b_hh).astype(jnp.float32), H, Hp)    # (4Hp,)

    # --- hoisted input-to-gates matmul: one big (T*B, E) x (E, 4Hp) pass ---
    pre_gates = jnp.einsum("tbe,ge->tbg", x_tm, w_ih_p) + b_p         # (T, Bp, 4Hp)

    Tc = max(1, min(time_chunk, T))
    Tp = _round_up(T, Tc)
    pre_gates = _pad_axis_to(pre_gates, 0, Tp)                        # (Tp, Bp, 4Hp)

    whh_t = jnp.transpose(w_hh_p)                                     # (Hp, 4Hp)

    lstm_kernel = functools.partial(_lstm_chunk_kernel, hidden_size=Hp, chunk=Tc)

    hs = pl.pallas_call(
        lstm_kernel,
        out_shape=jax.ShapeDtypeStruct((Tp, Bp, Hp), jnp.float32),
        grid_spec=pltpu.PrefetchScalarGridSpec(
            num_scalar_prefetch=0,
            grid=(Tp // Tc,),
            in_specs=[
                pl.BlockSpec((Tc, Bp, 4 * Hp), lambda s: (s, 0, 0)),  # pre-gates chunk
                pl.BlockSpec((Hp, 4 * Hp), lambda s: (0, 0)),         # W_hh^T
            ],
            out_specs=pl.BlockSpec((Tc, Bp, Hp), lambda s: (s, 0, 0)),
            scratch_shapes=[
                pltpu.VMEM((Bp, Hp), jnp.float32),                    # h state
                pltpu.VMEM((Bp, Hp), jnp.float32),                    # c state
            ],
        ),
        compiler_params=pltpu.CompilerParams(
            dimension_semantics=("arbitrary",),                       # sequential recurrence
        ),
    )(pre_gates, whh_t)

    # --- fc projection: one batched (T*Bp, Hp) x (Hp, Vp) tiled Pallas matmul ---
    hs = hs[:T]                                                       # (T, Bp, Hp)
    M = T * Bp
    tm = 128
    Mp = _round_up(M, tm)
    h_flat = _pad_axis_to(hs.reshape(M, Hp), 0, Mp)                   # (Mp, Hp)

    wfc_pad = jnp.pad(w_fc.astype(jnp.float32),
                      ((0, Vp - V), (0, Hp - H)))                     # (Vp, Hp)
    wfc_t = jnp.transpose(wfc_pad)                                    # (Hp, Vp)
    bfc_p = _pad_axis_to(b_fc.reshape(1, V).astype(jnp.float32), 1, Vp)  # (1, Vp)

    tn = 512 if Vp % 512 == 0 else (256 if Vp % 256 == 0 else 128)

    logits = pl.pallas_call(
        _fc_kernel,
        out_shape=jax.ShapeDtypeStruct((Mp, Vp), jnp.float32),
        grid_spec=pltpu.PrefetchScalarGridSpec(
            num_scalar_prefetch=0,
            grid=(Mp // tm, Vp // tn),
            in_specs=[
                pl.BlockSpec((tm, Hp), lambda i, j: (i, 0)),          # h rows
                pl.BlockSpec((Hp, tn), lambda i, j: (0, j)),          # W_fc^T cols
                pl.BlockSpec((1, tn), lambda i, j: (0, j)),           # b_fc cols
            ],
            out_specs=pl.BlockSpec((tm, tn), lambda i, j: (i, j)),
        ),
        compiler_params=pltpu.CompilerParams(
            dimension_semantics=("parallel", "parallel"),
        ),
    )(h_flat, wfc_t, bfc_p)

    logits = logits[:M, :V].reshape(T, Bp, V)[:, :B]                  # crop padding
    return jnp.transpose(logits, (1, 0, 2))                           # (B, T, V)


# ----------------------------- reference ------------------------------------


def _reference_forward(features, captions, params):
    """Pure-JAX reference of the same forward pass (for correctness check)."""
    emb_table = params["emb"]
    w_ih, w_hh = params["w_ih"], params["w_hh"]
    b = params["b_ih"] + params["b_hh"]
    w_fc, b_fc = params["w_fc"], params["b_fc"]
    H = w_hh.shape[1]

    caps = captions[:, :-1]
    embedded = jnp.take(emb_table, caps, axis=0)
    inputs = jnp.concatenate([features[:, None, :], embedded], axis=1)  # (B, T, E)
    B = inputs.shape[0]

    def step(carry, x_t):
        h, c = carry
        gates = x_t @ w_ih.T + h @ w_hh.T + b
        i = jax.nn.sigmoid(gates[:, 0 * H:1 * H])
        f = jax.nn.sigmoid(gates[:, 1 * H:2 * H])
        g = jnp.tanh(gates[:, 2 * H:3 * H])
        o = jax.nn.sigmoid(gates[:, 3 * H:4 * H])
        c = f * c + i * g
        h = o * jnp.tanh(c)
        return (h, c), h

    h0 = jnp.zeros((B, H), jnp.float32)
    c0 = jnp.zeros((B, H), jnp.float32)
    _, hs = lax.scan(step, (h0, c0), jnp.transpose(inputs, (1, 0, 2)))
    hs = jnp.transpose(hs, (1, 0, 2))                                   # (B, T, H)
    return hs @ w_fc.T + b_fc


def init_params(key, embed_size, hidden_size, vocab_size):
    ks = jax.random.split(key, 7)
    s = 0.1
    return {
        "emb":  s * jax.random.normal(ks[0], (vocab_size, embed_size), jnp.float32),
        "w_ih": s * jax.random.normal(ks[1], (4 * hidden_size, embed_size), jnp.float32),
        "w_hh": s * jax.random.normal(ks[2], (4 * hidden_size, hidden_size), jnp.float32),
        "b_ih": s * jax.random.normal(ks[3], (4 * hidden_size,), jnp.float32),
        "b_hh": s * jax.random.normal(ks[4], (4 * hidden_size,), jnp.float32),
        "w_fc": s * jax.random.normal(ks[5], (vocab_size, hidden_size), jnp.float32),
        "b_fc": s * jax.random.normal(ks[6], (vocab_size,), jnp.float32),
    }


# TODO(synk): greedy `sample()` (data-dependent while loop) and the unused
# BatchNorm1d (`self.norm1`) are not implemented; forward() never calls them.


if __name__ == "__main__":
    key = jax.random.PRNGKey(0)

    # Test 1: small, module-consistent shapes (already checked against reference).
    B, E, H, V, Tcap = 2, 32, 32, 64, 8
    k_feat, k_cap, k_param, key = jax.random.split(key, 4)
    params = init_params(k_param, E, H, V)
    features = jax.random.normal(k_feat, (B, E), jnp.float32)
    captions = jax.random.randint(k_cap, (B, Tcap), 0, V, dtype=jnp.int32)

    out = jax.block_until_ready(decoder_rnn_forward(features, captions, params))
    assert out.shape == (B, Tcap, V), out.shape
    ref = jax.block_until_ready(_reference_forward(features, captions, params))
    assert jnp.allclose(out, ref, rtol=1e-4, atol=1e-4), float(jnp.max(jnp.abs(out - ref)))

    # Test 2: non-aligned shapes to exercise the (8, 128) padding / time chunking.
    B2, E2, H2, V2, Tcap2 = 3, 20, 48, 150, 11
    k_feat2, k_cap2, k_param2, key = jax.random.split(key, 4)
    params2 = init_params(k_param2, E2, H2, V2)
    features2 = jax.random.normal(k_feat2, (B2, E2), jnp.float32)
    captions2 = jax.random.randint(k_cap2, (B2, Tcap2), 0, V2, dtype=jnp.int32)

    out2 = jax.block_until_ready(decoder_rnn_forward(features2, captions2, params2))
    assert out2.shape == (B2, Tcap2, V2), out2.shape
    ref2 = jax.block_until_ready(_reference_forward(features2, captions2, params2))
    assert jnp.allclose(out2, ref2, rtol=1e-4, atol=1e-4), float(jnp.max(jnp.abs(out2 - ref2)))

    print("KERNEL_OK")
</pallas_src>

<mosaic_0001>
module attributes {stable_mosaic.version = 11 : i64} {
  func.func @_lstm_chunk_kernel(%arg0: i32, %arg1: memref<8x8x512xf32, #tpu.memory_space<vmem>>, %arg2: memref<128x512xf32, #tpu.memory_space<vmem>>, %arg3: memref<8x8x128xf32, #tpu.memory_space<vmem>>, %arg4: memref<8x128xf32, #tpu.memory_space<vmem>>, %arg5: memref<8x128xf32, #tpu.memory_space<vmem>>) attributes {dimension_semantics = [#tpu.dimension_semantics<arbitrary>], iteration_bounds = array<i64: 1>, scalar_prefetch = 0 : i64, scratch_operands = 2 : i64, tpu.core_type = #tpu.core_type<tc>, window_params = [{transform_indices = @transform_0, window_bounds = array<i64: 8, 8, 512>}, {pipeline_mode = #tpu.pipeline_mode<synchronous>, transform_indices = @transform_1, window_bounds = array<i64: 128, 512>}, {transform_indices = @transform_2, window_bounds = array<i64: 8, 8, 128>}]} {
    %c0_i32 = arith.constant 0 : i32
    %0 = arith.cmpi eq, %arg0, %c0_i32 : i32
    %1 = arith.extui %0 : i1 to i32
    %c0_i32_0 = arith.constant 0 : i32
    %2 = arith.cmpi ne, %1, %c0_i32_0 : i32
    scf.if %2 {
      %cst_74 = arith.constant 0.000000e+00 : f32
      %280 = vector.broadcast %cst_74 : f32 to vector<8x128xf32>
      %c0_75 = arith.constant 0 : index
      %c0_76 = arith.constant 0 : index
      %281 = vector.load %arg4[%c0_75, %c0_76] : memref<8x128xf32, #tpu.memory_space<vmem>>, vector<8x128xf32>
      tpu.vector_store %arg4[%c0_75, %c0_76], %280 {strides = array<i32>} : memref<8x128xf32, #tpu.memory_space<vmem>>, vector<8x128xf32>,
      %cst_77 = arith.constant 0.000000e+00 : f32
      %282 = vector.broadcast %cst_77 : f32 to vector<8x128xf32>
      %c0_78 = arith.constant 0 : index
      %c0_79 = arith.constant 0 : index
      %283 = vector.load %arg5[%c0_78, %c0_79] : memref<8x128xf32, #tpu.memory_space<vmem>>, vector<8x128xf32>
      tpu.vector_store %arg5[%c0_78, %c0_79], %282 {strides = array<i32>} : memref<8x128xf32, #tpu.memory_space<vmem>>, vector<8x128xf32>,
    } else {
    }
    %c0 = arith.constant 0 : index
    %c0_1 = arith.constant 0 : index
    %3 = vector.load %arg2[%c0, %c0_1] : memref<128x512xf32, #tpu.memory_space<vmem>>, vector<128x512xf32>
    %c0_2 = arith.constant 0 : index
    %c0_3 = arith.constant 0 : index
    %4 = vector.load %arg4[%c0_2, %c0_3] : memref<8x128xf32, #tpu.memory_space<vmem>>, vector<8x128xf32>
    %c0_4 = arith.constant 0 : index
    %c0_5 = arith.constant 0 : index
    %5 = vector.load %arg5[%c0_4, %c0_5] : memref<8x128xf32, #tpu.memory_space<vmem>>, vector<8x128xf32>
    %c0_i32_6 = arith.constant 0 : i32
    %6 = arith.index_cast %c0_i32_6 : i32 to index
    %c0_7 = arith.constant 0 : index
    %c0_8 = arith.constant 0 : index
    %7 = vector.load %arg1[%6, %c0_7, %c0_8] : memref<8x8x512xf32, #tpu.memory_space<vmem>>, vector<1x8x512xf32>
    %8 = vector.shape_cast %7 : vector<1x8x512xf32> to vector<8x512xf32>
    %cst = arith.constant dense<0.000000e+00> : vector<8x512xf32>
    %9 = tpu.matmul %4, %3, %cst {dimension_numbers = #tpu.dot_dimension_numbers<[1], [0], [0], [1], [0, 0, 1, 1], [], []>} : vector<8x128xf32>, vector<128x512xf32>, vector<8x512xf32> -> vector<8x512xf32>
    %10 = arith.addf %8, %9 : vector<8x512xf32>
    %11 = vector.extract_strided_slice %10 {offsets = [0, 0], sizes = [8, 128], strides = [1, 1]} : vector<8x512xf32> to vector<8x128xf32>
    %12 = arith.negf %11 : vector<8x128xf32>
    %13 = math.exp %12 : vector<8x128xf32>
    %cst_9 = arith.constant 1.000000e+00 : f32
    %14 = vector.broadcast %cst_9 : f32 to vector<8x128xf32>
    %15 = arith.addf %14, %13 : vector<8x128xf32>
    %16 = arith.divf %14, %15 : vector<8x128xf32>
    %17 = vector.extract_strided_slice %10 {offsets = [0, 128], sizes = [8, 128], strides = [1, 1]} : vector<8x512xf32> to vector<8x128xf32>
    %18 = arith.negf %17 : vector<8x128xf32>
    %19 = math.exp %18 : vector<8x128xf32>
    %cst_10 = arith.constant 1.000000e+00 : f32
    %20 = vector.broadcast %cst_10 : f32 to vector<8x128xf32>
    %21 = arith.addf %20, %19 : vector<8x128xf32>
    %22 = arith.divf %20, %21 : vector<8x128xf32>
    %23 = vector.extract_strided_slice %10 {offsets = [0, 256], sizes = [8, 128], strides = [1, 1]} : vector<8x512xf32> to vector<8x128xf32>
    %24 = math.tanh %23 : vector<8x128xf32>
    %25 = vector.extract_strided_slice %10 {offsets = [0, 384], sizes = [8, 128], strides = [1, 1]} : vector<8x512xf32> to vector<8x128xf32>
    %26 = arith.negf %25 : vector<8x128xf32>
    %27 = math.exp %26 : vector<8x128xf32>
    %cst_11 = arith.constant 1.000000e+00 : f32
    %28 = vector.broadcast %cst_11 : f32 to vector<8x128xf32>
    %29 = arith.addf %28, %27 : vector<8x128xf32>
    %30 = arith.divf %28, %29 : vector<8x128xf32>
    %31 = arith.mulf %22, %5 : vector<8x128xf32>
    %32 = arith.mulf %16, %24 : vector<8x128xf32>
    %33 = arith.addf %31, %32 : vector<8x128xf32>
    %34 = math.tanh %33 : vector<8x128xf32>
    %35 = arith.mulf %30, %34 : vector<8x128xf32>
    %36 = arith.index_cast %c0_i32_6 : i32 to index
    %c0_12 = arith.constant 0 : index
    %c0_13 = arith.constant 0 : index
    %37 = vector.load %arg3[%36, %c0_12, %c0_13] : memref<8x8x128xf32, #tpu.memory_space<vmem>>, vector<1x8x128xf32>
    %38 = vector.shape_cast %37 : vector<1x8x128xf32> to vector<8x128xf32>
    %39 = vector.shape_cast %35 : vector<8x128xf32> to vector<1x8x128xf32>
    tpu.vector_store %arg3[%36, %c0_12, %c0_13], %39 {strides = array<i32>} : memref<8x8x128xf32, #tpu.memory_space<vmem>>, vector<1x8x128xf32>,
    %c1_i32 = arith.constant 1 : i32
    %40 = arith.index_cast %c1_i32 : i32 to index
    %c0_14 = arith.constant 0 : index
    %c0_15 = arith.constant 0 : index
    %41 = vector.load %arg1[%40, %c0_14, %c0_15] : memref<8x8x512xf32, #tpu.memory_space<vmem>>, vector<1x8x512xf32>
    %42 = vector.shape_cast %41 : vector<1x8x512xf32> to vector<8x512xf32>
    %cst_16 = arith.constant dense<0.000000e+00> : vector<8x512xf32>
    %43 = tpu.matmul %35, %3, %cst_16 {dimension_numbers = #tpu.dot_dimension_numbers<[1], [0], [0], [1], [0, 0, 1, 1], [], []>} : vector<8x128xf32>, vector<128x512xf32>, vector<8x512xf32> -> vector<8x512xf32>
    %44 = arith.addf %42, %43 : vector<8x512xf32>
    %45 = vector.extract_strided_slice %44 {offsets = [0, 0], sizes = [8, 128], strides = [1, 1]} : vector<8x512xf32> to vector<8x128xf32>
    %46 = arith.negf %45 : vector<8x128xf32>
    %47 = math.exp %46 : vector<8x128xf32>
    %cst_17 = arith.constant 1.000000e+00 : f32
    %48 = vector.broadcast %cst_17 : f32 to vector<8x128xf32>
    %49 = arith.addf %48, %47 : vector<8x128xf32>
    %50 = arith.divf %48, %49 : vector<8x128xf32>
    %51 = vector.extract_strided_slice %44 {offsets = [0, 128], sizes = [8, 128], strides = [1, 1]} : vector<8x512xf32> to vector<8x128xf32>
    %52 = arith.negf %51 : vector<8x128xf32>
    %53 = math.exp %52 : vector<8x128xf32>
    %cst_18 = arith.constant 1.000000e+00 : f32
    %54 = vector.broadcast %cst_18 : f32 to vector<8x128xf32>
    %55 = arith.addf %54, %53 : vector<8x128xf32>
    %56 = arith.divf %54, %55 : vector<8x128xf32>
    %57 = vector.extract_strided_slice %44 {offsets = [0, 256], sizes = [8, 128], strides = [1, 1]} : vector<8x512xf32> to vector<8x128xf32>
    %58 = math.tanh %57 : vector<8x128xf32>
    %59 = vector.extract_strided_slice %44 {offsets = [0, 384], sizes = [8, 128], strides = [1, 1]} : vector<8x512xf32> to vector<8x128xf32>
    %60 = arith.negf %59 : vector<8x128xf32>
    %61 = math.exp %60 : vector<8x128xf32>
    %cst_19 = arith.constant 1.000000e+00 : f32
    %62 = vector.broadcast %cst_19 : f32 to vector<8x128xf32>
    %63 = arith.addf %62, %61 : vector<8x128xf32>
    %64 = arith.divf %62, %63 : vector<8x128xf32>
    %65 = arith.mulf %56, %33 : vector<8x128xf32>
    %66 = arith.mulf %50, %58 : vector<8x128xf32>
    %67 = arith.addf %65, %66 : vector<8x128xf32>
    %68 = math.tanh %67 : vector<8x128xf32>
    %69 = arith.mulf %64, %68 : vector<8x128xf32>
    %70 = arith.index_cast %c1_i32 : i32 to index
    %c0_20 = arith.constant 0 : index
    %c0_21 = arith.constant 0 : index
    %71 = vector.load %arg3[%70, %c0_20, %c0_21] : memref<8x8x128xf32, #tpu.memory_space<vmem>>, vector<1x8x128xf32>
    %72 = vector.shape_cast %71 : vector<1x8x128xf32> to vector<8x128xf32>
    %73 = vector.shape_cast %69 : vector<8x128xf32> to vector<1x8x128xf32>
    tpu.vector_store %arg3[%70, %c0_20, %c0_21], %73 {strides = array<i32>} : memref<8x8x128xf32, #tpu.memory_space<vmem>>, vector<1x8x128xf32>,
    %c2_i32 = arith.constant 2 : i32
    %74 = arith.index_cast %c2_i32 : i32 to index
    %c0_22 = arith.constant 0 : index
    %c0_23 = arith.constant 0 : index
    %75 = vector.load %arg1[%74, %c0_22, %c0_23] : memref<8x8x512xf32, #tpu.memory_space<vmem>>, vector<1x8x512xf32>
    %76 = vector.shape_cast %75 : vector<1x8x512xf32> to vector<8x512xf32>
    %cst_24 = arith.constant dense<0.000000e+00> : vector<8x512xf32>
    %77 = tpu.matmul %69, %3, %cst_24 {dimension_numbers = #tpu.dot_dimension_numbers<[1], [0], [0], [1], [0, 0, 1, 1], [], []>} : vector<8x128xf32>, vector<128x512xf32>, vector<8x512xf32> -> vector<8x512xf32>
    %78 = arith.addf %76, %77 : vector<8x512xf32>
    %79 = vector.extract_strided_slice %78 {offsets = [0, 0], sizes = [8, 128], strides = [1, 1]} : vector<8x512xf32> to vector<8x128xf32>
    %80 = arith.negf %79 : vector<8x128xf32>
    %81 = math.exp %80 : vector<8x128xf32>
    %cst_25 = arith.constant 1.000000e+00 : f32
    %82 = vector.broadcast %cst_25 : f32 to vector<8x128xf32>
    %83 = arith.addf %82, %81 : vector<8x128xf32>
    %84 = arith.divf %82, %83 : vector<8x128xf32>
    %85 = vector.extract_strided_slice %78 {offsets = [0, 128], sizes = [8, 128], strides = [1, 1]} : vector<8x512xf32> to vector<8x128xf32>
    %86 = arith.negf %85 : vector<8x128xf32>
    %87 = math.exp %86 : vector<8x128xf32>
    %cst_26 = arith.constant 1.000000e+00 : f32
    %88 = vector.broadcast %cst_26 : f32 to vector<8x128xf32>
    %89 = arith.addf %88, %87 : vector<8x128xf32>
    %90 = arith.divf %88, %89 : vector<8x128xf32>
    %91 = vector.extract_strided_slice %78 {offsets = [0, 256], sizes = [8, 128], strides = [1, 1]} : vector<8x512xf32> to vector<8x128xf32>
    %92 = math.tanh %91 : vector<8x128xf32>
    %93 = vector.extract_strided_slice %78 {offsets = [0, 384], sizes = [8, 128], strides = [1, 1]} : vector<8x512xf32> to vector<8x128xf32>
    %94 = arith.negf %93 : vector<8x128xf32>
    %95 = math.exp %94 : vector<8x128xf32>
    %cst_27 = arith.constant 1.000000e+00 : f32
    %96 = vector.broadcast %cst_27 : f32 to vector<8x128xf32>
    %97 = arith.addf %96, %95 : vector<8x128xf32>
    %98 = arith.divf %96, %97 : vector<8x128xf32>
    %99 = arith.mulf %90, %67 : vector<8x128xf32>
    %100 = arith.mulf %84, %92 : vector<8x128xf32>
    %101 = arith.addf %99, %100 : vector<8x128xf32>
    %102 = math.tanh %101 : vector<8x128xf32>
    %103 = arith.mulf %98, %102 : vector<8x128xf32>
    %104 = arith.index_cast %c2_i32 : i32 to index
    %c0_28 = arith.constant 0 : index
    %c0_29 = arith.constant 0 : index
    %105 = vector.load %arg3[%104, %c0_28, %c0_29] : memref<8x8x128xf32, #tpu.memory_space<vmem>>, vector<1x8x128xf32>
    %106 = vector.shape_cast %105 : vector<1x8x128xf32> to vector<8x128xf32>
    %107 = vector.shape_cast %103 : vector<8x128xf32> to vector<1x8x128xf32>
    tpu.vector_store %arg3[%104, %c0_28, %c0_29], %107 {strides = array<i32>} : memref<8x8x128xf32, #tpu.memory_space<vmem>>, vector<1x8x128xf32>,
    %c3_i32 = arith.constant 3 : i32
    %108 = arith.index_cast %c3_i32 : i32 to index
    %c0_30 = arith.constant 0 : index
    %c0_31 = arith.constant 0 : index
    %109 = vector.load %arg1[%108, %c0_30, %c0_31] : memref<8x8x512xf32, #tpu.memory_space<vmem>>, vector<1x8x512xf32>
    %110 = vector.shape_cast %109 : vector<1x8x512xf32> to vector<8x512xf32>
    %cst_32 = arith.constant dense<0.000000e+00> : vector<8x512xf32>
    %111 = tpu.matmul %103, %3, %cst_32 {dimension_numbers = #tpu.dot_dimension_numbers<[1], [0], [0], [1], [0, 0, 1, 1], [], []>} : vector<8x128xf32>, vector<128x512xf32>, vector<8x512xf32> -> vector<8x512xf32>
    %112 = arith.addf %110, %111 : vector<8x512xf32>
    %113 = vector.extract_strided_slice %112 {offsets = [0, 0], sizes = [8, 128], strides = [1, 1]} : vector<8x512xf32> to vector<8x128xf32>
    %114 = arith.negf %113 : vector<8x128xf32>
    %115 = math.exp %114 : vector<8x128xf32>
    %cst_33 = arith.constant 1.000000e+00 : f32
    %116 = vector.broadcast %cst_33 : f32 to vector<8x128xf32>
    %117 = arith.addf %116, %115 : vector<8x128xf32>
    %118 = arith.divf %116, %117 : vector<8x128xf32>
    %119 = vector.extract_strided_slice %112 {offsets = [0, 128], sizes = [8, 128], strides = [1, 1]} : vector<8x512xf32> to vector<8x128xf32>
    %120 = arith.negf %119 : vector<8x128xf32>
    %121 = math.exp %120 : vector<8x128xf32>
    %cst_34 = arith.constant 1.000000e+00 : f32
    %122 = vector.broadcast %cst_34 : f32 to vector<8x128xf32>
    %123 = arith.addf %122, %121 : vector<8x128xf32>
    %124 = arith.divf %122, %123 : vector<8x128xf32>
    %125 = vector.extract_strided_slice %112 {offsets = [0, 256], sizes = [8, 128], strides = [1, 1]} : vector<8x512xf32> to vector<8x128xf32>
    %126 = math.tanh %125 : vector<8x128xf32>
    %127 = vector.extract_strided_slice %112 {offsets = [0, 384], sizes = [8, 128], strides = [1, 1]} : vector<8x512xf32> to vector<8x128xf32>
    %128 = arith.negf %127 : vector<8x128xf32>
    %129 = math.exp %128 : vector<8x128xf32>
    %cst_35 = arith.constant 1.000000e+00 : f32
    %130 = vector.broadcast %cst_35 : f32 to vector<8x128xf32>
    %131 = arith.addf %130, %129 : vector<8x128xf32>
    %132 = arith.divf %130, %131 : vector<8x128xf32>
    %133 = arith.mulf %124, %101 : vector<8x128xf32>
    %134 = arith.mulf %118, %126 : vector<8x128xf32>
    %135 = arith.addf %133, %134 : vector<8x128xf32>
    %136 = math.tanh %135 : vector<8x128xf32>
    %137 = arith.mulf %132, %136 : vector<8x128xf32>
    %138 = arith.index_cast %c3_i32 : i32 to index
    %c0_36 = arith.constant 0 : index
    %c0_37 = arith.constant 0 : index
    %139 = vector.load %arg3[%138, %c0_36, %c0_37] : memref<8x8x128xf32, #tpu.memory_space<vmem>>, vector<1x8x128xf32>
    %140 = vector.shape_cast %139 : vector<1x8x128xf32> to vector<8x128xf32>
    %141 = vector.shape_cast %137 : vector<8x128xf32> to vector<1x8x128xf32>
    tpu.vector_store %arg3[%138, %c0_36, %c0_37], %141 {strides = array<i32>} : memref<8x8x128xf32, #tpu.memory_space<vmem>>, vector<1x8x128xf32>,
    %c4_i32 = arith.constant 4 : i32
    %142 = arith.index_cast %c4_i32 : i32 to index
    %c0_38 = arith.constant 0 : index
    %c0_39 = arith.constant 0 : index
    %143 = vector.load %arg1[%142, %c0_38, %c0_39] : memref<8x8x512xf32, #tpu.memory_space<vmem>>, vector<1x8x512xf32>
    %144 = vector.shape_cast %143 : vector<1x8x512xf32> to vector<8x512xf32>
    %cst_40 = arith.constant dense<0.000000e+00> : vector<8x512xf32>
    %145 = tpu.matmul %137, %3, %cst_40 {dimension_numbers = #tpu.dot_dimension_numbers<[1], [0], [0], [1], [0, 0, 1, 1], [], []>} : vector<8x128xf32>, vector<128x512xf32>, vector<8x512xf32> -> vector<8x512xf32>
    %146 = arith.addf %144, %145 : vector<8x512xf32>
    %147 = vector.extract_strided_slice %146 {offsets = [0, 0], sizes = [8, 128], strides = [1, 1]} : vector<8x512xf32> to vector<8x128xf32>
    %148 = arith.negf %147 : vector<8x128xf32>
    %149 = math.exp %148 : vector<8x128xf32>
    %cst_41 = arith.constant 1.000000e+00 : f32
    %150 = vector.broadcast %cst_41 : f32 to vector<8x128xf32>
    %151 = arith.addf %150, %149 : vector<8x128xf32>
    %152 = arith.divf %150, %151 : vector<8x128xf32>
    %153 = vector.extract_strided_slice %146 {offsets = [0, 128], sizes = [8, 128], strides = [1, 1]} : vector<8x512xf32> to vector<8x128xf32>
    %154 = arith.negf %153 : vector<8x128xf32>
    %155 = math.exp %154 : vector<8x128xf32>
    %cst_42 = arith.constant 1.000000e+00 : f32
    %156 = vector.broadcast %cst_42 : f32 to vector<8x128xf32>
    %157 = arith.addf %156, %155 : vector<8x128xf32>
    %158 = arith.divf %156, %157 : vector<8x128xf32>
    %159 = vector.extract_strided_slice %146 {offsets = [0, 256], sizes = [8, 128], strides = [1, 1]} : vector<8x512xf32> to vector<8x128xf32>
    %160 = math.tanh %159 : vector<8x128xf32>
    %161 = vector.extract_strided_slice %146 {offsets = [0, 384], sizes = [8, 128], strides = [1, 1]} : vector<8x512xf32> to vector<8x128xf32>
    %162 = arith.negf %161 : vector<8x128xf32>
    %163 = math.exp %162 : vector<8x128xf32>
    %cst_43 = arith.constant 1.000000e+00 : f32
    %164 = vector.broadcast %cst_43 : f32 to vector<8x128xf32>
    %165 = arith.addf %164, %163 : vector<8x128xf32>
    %166 = arith.divf %164, %165 : vector<8x128xf32>
    %167 = arith.mulf %158, %135 : vector<8x128xf32>
    %168 = arith.mulf %152, %160 : vector<8x128xf32>
    %169 = arith.addf %167, %168 : vector<8x128xf32>
    %170 = math.tanh %169 : vector<8x128xf32>
    %171 = arith.mulf %166, %170 : vector<8x128xf32>
    %172 = arith.index_cast %c4_i32 : i32 to index
    %c0_44 = arith.constant 0 : index
    %c0_45 = arith.constant 0 : index
    %173 = vector.load %arg3[%172, %c0_44, %c0_45] : memref<8x8x128xf32, #tpu.memory_space<vmem>>, vector<1x8x128xf32>
    %174 = vector.shape_cast %173 : vector<1x8x128xf32> to vector<8x128xf32>
    %175 = vector.shape_cast %171 : vector<8x128xf32> to vector<1x8x128xf32>
    tpu.vector_store %arg3[%172, %c0_44, %c0_45], %175 {strides = array<i32>} : memref<8x8x128xf32, #tpu.memory_space<vmem>>, vector<1x8x128xf32>,
    %c5_i32 = arith.constant 5 : i32
    %176 = arith.index_cast %c5_i32 : i32 to index
    %c0_46 = arith.constant 0 : index
    %c0_47 = arith.constant 0 : index
    %177 = vector.load %arg1[%176, %c0_46, %c0_47] : memref<8x8x512xf32, #tpu.memory_space<vmem>>, vector<1x8x512xf32>
    %178 = vector.shape_cast %177 : vector<1x8x512xf32> to vector<8x512xf32>
    %cst_48 = arith.constant dense<0.000000e+00> : vector<8x512xf32>
    %179 = tpu.matmul %171, %3, %cst_48 {dimension_numbers = #tpu.dot_dimension_numbers<[1], [0], [0], [1], [0, 0, 1, 1], [], []>} : vector<8x128xf32>, vector<128x512xf32>, vector<8x512xf32> -> vector<8x512xf32>
    %180 = arith.addf %178, %179 : vector<8x512xf32>
    %181 = vector.extract_strided_slice %180 {offsets = [0, 0], sizes = [8, 128], strides = [1, 1]} : vector<8x512xf32> to vector<8x128xf32>
    %182 = arith.negf %181 : vector<8x128xf32>
    %183 = math.exp %182 : vector<8x128xf32>
    %cst_49 = arith.constant 1.000000e+00 : f32
    %184 = vector.broadcast %cst_49 : f32 to vector<8x128xf32>
    %185 = arith.addf %184, %183 : vector<8x128xf32>
    %186 = arith.divf %184, %185 : vector<8x128xf32>
    %187 = vector.extract_strided_slice %180 {offsets = [0, 128], sizes = [8, 128], strides = [1, 1]} : vector<8x512xf32> to vector<8x128xf32>
    %188 = arith.negf %187 : vector<8x128xf32>
    %189 = math.exp %188 : vector<8x128xf32>
    %cst_50 = arith.constant 1.000000e+00 : f32
    %190 = vector.broadcast %cst_50 : f32 to vector<8x128xf32>
    %191 = arith.addf %190, %189 : vector<8x128xf32>
    %192 = arith.divf %190, %191 : vector<8x128xf32>
    %193 = vector.extract_strided_slice %180 {offsets = [0, 256], sizes = [8, 128], strides = [1, 1]} : vector<8x512xf32> to vector<8x128xf32>
    %194 = math.tanh %193 : vector<8x128xf32>
    %195 = vector.extract_strided_slice %180 {offsets = [0, 384], sizes = [8, 128], strides = [1, 1]} : vector<8x512xf32> to vector<8x128xf32>
    %196 = arith.negf %195 : vector<8x128xf32>
    %197 = math.exp %196 : vector<8x128xf32>
    %cst_51 = arith.constant 1.000000e+00 : f32
    %198 = vector.broadcast %cst_51 : f32 to vector<8x128xf32>
    %199 = arith.addf %198, %197 : vector<8x128xf32>
    %200 = arith.divf %198, %199 : vector<8x128xf32>
    %201 = arith.mulf %192, %169 : vector<8x128xf32>
    %202 = arith.mulf %186, %194 : vector<8x128xf32>
    %203 = arith.addf %201, %202 : vector<8x128xf32>
    %204 = math.tanh %203 : vector<8x128xf32>
    %205 = arith.mulf %200, %204 : vector<8x128xf32>
    %206 = arith.index_cast %c5_i32 : i32 to index
    %c0_52 = arith.constant 0 : index
    %c0_53 = arith.constant 0 : index
    %207 = vector.load %arg3[%206, %c0_52, %c0_53] : memref<8x8x128xf32, #tpu.memory_space<vmem>>, vector<1x8x128xf32>
    %208 = vector.shape_cast %207 : vector<1x8x128xf32> to vector<8x128xf32>
    %209 = vector.shape_cast %205 : vector<8x128xf32> to vector<1x8x128xf32>
    tpu.vector_store %arg3[%206, %c0_52, %c0_53], %209 {strides = array<i32>} : memref<8x8x128xf32, #tpu.memory_space<vmem>>, vector<1x8x128xf32>,
    %c6_i32 = arith.constant 6 : i32
    %210 = arith.index_cast %c6_i32 : i32 to index
    %c0_54 = arith.constant 0 : index
    %c0_55 = arith.constant 0 : index
    %211 = vector.load %arg1[%210, %c0_54, %c0_55] : memref<8x8x512xf32, #tpu.memory_space<vmem>>, vector<1x8x512xf32>
    %212 = vector.shape_cast %211 : vector<1x8x512xf32> to vector<8x512xf32>
    %cst_56 = arith.constant dense<0.000000e+00> : vector<8x512xf32>
    %213 = tpu.matmul %205, %3, %cst_56 {dimension_numbers = #tpu.dot_dimension_numbers<[1], [0], [0], [1], [0, 0, 1, 1], [], []>} : vector<8x128xf32>, vector<128x512xf32>, vector<8x512xf32> -> vector<8x512xf32>
    %214 = arith.addf %212, %213 : vector<8x512xf32>
    %215 = vector.extract_strided_slice %214 {offsets = [0, 0], sizes = [8, 128], strides = [1, 1]} : vector<8x512xf32> to vector<8x128xf32>
    %216 = arith.negf %215 : vector<8x128xf32>
    %217 = math.exp %216 : vector<8x128xf32>
    %cst_57 = arith.constant 1.000000e+00 : f32
    %218 = vector.broadcast %cst_57 : f32 to vector<8x128xf32>
    %219 = arith.addf %218, %217 : vector<8x128xf32>
    %220 = arith.divf %218, %219 : vector<8x128xf32>
    %221 = vector.extract_strided_slice %214 {offsets = [0, 128], sizes = [8, 128], strides = [1, 1]} : vector<8x512xf32> to vector<8x128xf32>
    %222 = arith.negf %221 : vector<8x128xf32>
    %223 = math.exp %222 : vector<8x128xf32>
    %cst_58 = arith.constant 1.000000e+00 : f32
    %224 = vector.broadcast %cst_58 : f32 to vector<8x128xf32>
    %225 = arith.addf %224, %223 : vector<8x128xf32>
    %226 = arith.divf %224, %225 : vector<8x128xf32>
    %227 = vector.extract_strided_slice %214 {offsets = [0, 256], sizes = [8, 128], strides = [1, 1]} : vector<8x512xf32> to vector<8x128xf32>
    %228 = math.tanh %227 : vector<8x128xf32>
    %229 = vector.extract_strided_slice %214 {offsets = [0, 384], sizes = [8, 128], strides = [1, 1]} : vector<8x512xf32> to vector<8x128xf32>
    %230 = arith.negf %229 : vector<8x128xf32>
    %231 = math.exp %230 : vector<8x128xf32>
    %cst_59 = arith.constant 1.000000e+00 : f32
    %232 = vector.broadcast %cst_59 : f32 to vector<8x128xf32>
    %233 = arith.addf %232, %231 : vector<8x128xf32>
    %234 = arith.divf %232, %233 : vector<8x128xf32>
    %235 = arith.mulf %226, %203 : vector<8x128xf32>
    %236 = arith.mulf %220, %228 : vector<8x128xf32>
    %237 = arith.addf %235, %236 : vector<8x128xf32>
    %238 = math.tanh %237 : vector<8x128xf32>
    %239 = arith.mulf %234, %238 : vector<8x128xf32>
    %240 = arith.index_cast %c6_i32 : i32 to index
    %c0_60 = arith.constant 0 : index
    %c0_61 = arith.constant 0 : index
    %241 = vector.load %arg3[%240, %c0_60, %c0_61] : memref<8x8x128xf32, #tpu.memory_space<vmem>>, vector<1x8x128xf32>
    %242 = vector.shape_cast %241 : vector<1x8x128xf32> to vector<8x128xf32>
    %243 = vector.shape_cast %239 : vector<8x128xf32> to vector<1x8x128xf32>
    tpu.vector_store %arg3[%240, %c0_60, %c0_61], %243 {strides = array<i32>} : memref<8x8x128xf32, #tpu.memory_space<vmem>>, vector<1x8x128xf32>,
    %c7_i32 = arith.constant 7 : i32
    %244 = arith.index_cast %c7_i32 : i32 to index
    %c0_62 = arith.constant 0 : index
    %c0_63 = arith.constant 0 : index
    %245 = vector.load %arg1[%244, %c0_62, %c0_63] : memref<8x8x512xf32, #tpu.memory_space<vmem>>, vector<1x8x512xf32>
    %246 = vector.shape_cast %245 : vector<1x8x512xf32> to vector<8x512xf32>
    %cst_64 = arith.constant dense<0.000000e+00> : vector<8x512xf32>
    %247 = tpu.matmul %239, %3, %cst_64 {dimension_numbers = #tpu.dot_dimension_numbers<[1], [0], [0], [1], [0, 0, 1, 1], [], []>} : vector<8x128xf32>, vector<128x512xf32>, vector<8x512xf32> -> vector<8x512xf32>
    %248 = arith.addf %246, %247 : vector<8x512xf32>
    %249 = vector.extract_strided_slice %248 {offsets = [0, 0], sizes = [8, 128], strides = [1, 1]} : vector<8x512xf32> to vector<8x128xf32>
    %250 = arith.negf %249 : vector<8x128xf32>
    %251 = math.exp %250 : vector<8x128xf32>
    %cst_65 = arith.constant 1.000000e+00 : f32
    %252 = vector.broadcast %cst_65 : f32 to vector<8x128xf32>
    %253 = arith.addf %252, %251 : vector<8x128xf32>
    %254 = arith.divf %252, %253 : vector<8x128xf32>
    %255 = vector.extract_strided_slice %248 {offsets = [0, 128], sizes = [8, 128], strides = [1, 1]} : vector<8x512xf32> to vector<8x128xf32>
    %256 = arith.negf %255 : vector<8x128xf32>
    %257 = math.exp %256 : vector<8x128xf32>
    %cst_66 = arith.constant 1.000000e+00 : f32
    %258 = vector.broadcast %cst_66 : f32 to vector<8x128xf32>
    %259 = arith.addf %258, %257 : vector<8x128xf32>
    %260 = arith.divf %258, %259 : vector<8x128xf32>
    %261 = vector.extract_strided_slice %248 {offsets = [0, 256], sizes = [8, 128], strides = [1, 1]} : vector<8x512xf32> to vector<8x128xf32>
    %262 = math.tanh %261 : vector<8x128xf32>
    %263 = vector.extract_strided_slice %248 {offsets = [0, 384], sizes = [8, 128], strides = [1, 1]} : vector<8x512xf32> to vector<8x128xf32>
    %264 = arith.negf %263 : vector<8x128xf32>
    %265 = math.exp %264 : vector<8x128xf32>
    %cst_67 = arith.constant 1.000000e+00 : f32
    %266 = vector.broadcast %cst_67 : f32 to vector<8x128xf32>
    %267 = arith.addf %266, %265 : vector<8x128xf32>
    %268 = arith.divf %266, %267 : vector<8x128xf32>
    %269 = arith.mulf %260, %237 : vector<8x128xf32>
    %270 = arith.mulf %254, %262 : vector<8x128xf32>
    %271 = arith.addf %269, %270 : vector<8x128xf32>
    %272 = math.tanh %271 : vector<8x128xf32>
    %273 = arith.mulf %268, %272 : vector<8x128xf32>
    %274 = arith.index_cast %c7_i32 : i32 to index
    %c0_68 = arith.constant 0 : index
    %c0_69 = arith.constant 0 : index
    %275 = vector.load %arg3[%274, %c0_68, %c0_69] : memref<8x8x128xf32, #tpu.memory_space<vmem>>, vector<1x8x128xf32>
    %276 = vector.shape_cast %275 : vector<1x8x128xf32> to vector<8x128xf32>
    %277 = vector.shape_cast %273 : vector<8x128xf32> to vector<1x8x128xf32>
    tpu.vector_store %arg3[%274, %c0_68, %c0_69], %277 {strides = array<i32>} : memref<8x8x128xf32, #tpu.memory_space<vmem>>, vector<1x8x128xf32>,
    %c8_i32 = arith.constant 8 : i32
    %c0_70 = arith.constant 0 : index
    %c0_71 = arith.constant 0 : index
    %278 = vector.load %arg4[%c0_70, %c0_71] : memref<8x128xf32, #tpu.memory_space<vmem>>, vector<8x128xf32>
    tpu.vector_store %arg4[%c0_70, %c0_71], %273 {strides = array<i32>} : memref<8x128xf32, #tpu.memory_space<vmem>>, vector<8x128xf32>,
    %c0_72 = arith.constant 0 : index
    %c0_73 = arith.constant 0 : index
    %279 = vector.load %arg5[%c0_72, %c0_73] : memref<8x128xf32, #tpu.memory_space<vmem>>, vector<8x128xf32>
    tpu.vector_store %arg5[%c0_72, %c0_73], %271 {strides = array<i32>} : memref<8x128xf32, #tpu.memory_space<vmem>>, vector<8x128xf32>,
    return
  }
  func.func @transform_0(%arg0: i32) -> (i32, i32, i32) {
    %c0_i32 = arith.constant 0 : i32
    %c0_i32_0 = arith.constant 0 : i32
    %c0_i32_1 = arith.constant 0 : i32
    return %arg0, %c0_i32, %c0_i32_0 : i32, i32, i32
  }
  func.func @transform_1(%arg0: i32) -> (i32, i32) {
    %c0_i32 = arith.constant 0 : i32
    %c0_i32_0 = arith.constant 0 : i32
    %c0_i32_1 = arith.constant 0 : i32
    return %c0_i32, %c0_i32_0 : i32, i32
  }
  func.func @transform_2(%arg0: i32) -> (i32, i32, i32) {
    %c0_i32 = arith.constant 0 : i32
    %c0_i32_0 = arith.constant 0 : i32
    %c0_i32_1 = arith.constant 0 : i32
    return %arg0, %c0_i32, %c0_i32_0 : i32, i32, i32
  }
}

</mosaic_0001>

<llo_original>
// kernel: tpu_custom_call.1
$region0: #{tpu_custom_call.1}
  #allocation0 [shape = 'u32[]', space=smem, size = 0x4, offset = 0x4, fixed_abs, tag = 'smem constant byte address 0x4 - core index']
  #allocation1 [shape = 'u32[72,128]{1,0:T(1,128)}', space=vmem, size = 0x9000, scoped, tag = 'internal scratch']
  #allocation2 [shape = 'f32[8,128]{1,0:T(8,128)}', space=vmem, size = 0x1000, scoped, tag = 'scratch operand']
  #allocation3 [shape = 'f32[8,128]{1,0:T(8,128)}', space=vmem, size = 0x1000, scoped, tag = 'scratch operand']
  %s0 = inlined_call_operand.hbm [shape: f32[8,8,512], index: 0, kind: input, shape index: {}]
  %s1 = inlined_call_operand.hbm [shape: f32[128,512], index: 1, kind: input, shape index: {}]
  %s2 = inlined_call_operand.hbm [shape: f32[8,8,128], index: 2, kind: output, shape index: {}]
  %s3 = sld [smem:[#allocation0]]
  $region30: #{tpu_custom_call.1} parent=0
    _
  %s5 = ssub.s32 1, %s3
  %s6 = scalar_select 0, %s5, %s3
  $region1: #{tpu_custom_call.1} parent=0
    #allocation4 [shape = 'u8[131072]{0}', space=vmem, size = 0x20000, scoped, tag = 'input window, operand 0, single buffered']
    #allocation5 [shape = 's32[1]{0}', space=sflag, size = 0x4, scoped, tag = 'scoped memory for tpu_custom_call.1']
    #allocation6 [shape = 's32[1]{0}', space=sflag, size = 0x4, scoped, tag = 'scoped memory for tpu_custom_call.1']
    #allocation7 [shape = 'u8[262144]{0}', space=vmem, size = 0x40000, scoped, tag = 'input window, operand 1, single buffered']
    #allocation8 [shape = 's32[1]{0}', space=sflag, size = 0x4, scoped, tag = 'scoped memory for tpu_custom_call.1']
    #allocation9 [shape = 'u8[32768]{0}', space=vmem, size = 0x8000, scoped, tag = 'output window, operand 0, single buffered']
    %7 = vsyncpa [#allocation5], 0
    %8 = vsyncpa [#allocation8], 0
    %9 = vsyncpa [#allocation6], 0
    // Predicated region
    $region2: #{tpu_custom_call.1} parent=1 // pred_check
      _
    $region3: #{tpu_custom_call.1} parent=1 // pred_check_branch
      %11 = sbr.rel (0) target = $region5
    $region4: #{tpu_custom_call.1} parent=1 // pred_region
      %13 = vsyncadd [#allocation5], 0
      %s14 = sshll.u32 %s0, 4
      %s15 = int_to_ptr.hbm [resolvable:$true] %s14
      %s16 = sshll.u32 [#allocation4], 4
      %s17 = int_to_ptr.vmem [resolvable:$true] %s16
      %22 = dma.hbm_to_vmem [thread:$0]  %s15, 4096, %s17, [#allocation5], 512, 512, 32
    $region5: #{tpu_custom_call.1} parent=1 // pred_fallthru
      _
    // Predicated region
    $region6: #{tpu_custom_call.1} parent=1 // pred_check
      _
    $region7: #{tpu_custom_call.1} parent=1 // pred_check_branch
      %24 = sbr.rel (0) target = $region9
    $region8: #{tpu_custom_call.1} parent=1 // pred_region
      %26 = vsyncadd [#allocation8], 0
      %s27 = sshll.u32 %s1, 4
      %s28 = int_to_ptr.hbm [resolvable:$true] %s27
      %s29 = sshll.u32 [#allocation7], 4
      %s30 = int_to_ptr.vmem [resolvable:$true] %s29
      %35 = dma.hbm_to_vmem [thread:$0]  %s28, 8192, %s30, [#allocation8], 512, 512, 32
    $region9: #{tpu_custom_call.1} parent=1 // pred_fallthru
      _
    // Predicated region
    $region10: #{tpu_custom_call.1} parent=1 // pred_check
      _
    $region11: #{tpu_custom_call.1} parent=1 // pred_check_branch
      %37 = sbr.rel (0) target = $region13
    $region12: #{tpu_custom_call.1} parent=1 // pred_region
      %39 = dma.done [#allocation5], 4096
    $region13: #{tpu_custom_call.1} parent=1 // pred_fallthru
      _
    // Predicated region
    $region14: #{tpu_custom_call.1} parent=1 // pred_check
      _
    $region15: #{tpu_custom_call.1} parent=1 // pred_check_branch
      %41 = sbr.rel (0) target = $region17
    $region16: #{tpu_custom_call.1} parent=1 // pred_region
      %43 = dma.done [#allocation8], 8192
    $region17: #{tpu_custom_call.1} parent=1 // pred_fallthru
      _
    %p44 = scmp.eq.s32.totalorder 0, 0
    // Predicated region
    $region18: #{tpu_custom_call.1} parent=1 // pred_check
      %p45 = pneg %p44
    $region19: #{tpu_custom_call.1} parent=1 // pred_check_branch
      %47 = sbr.rel (%p45) target = $region21
    $region20: #{tpu_custom_call.1} parent=1 // pred_region
      %48 = vst [vmem:[#allocation2] sm:$0xff] 0.0
      %49 = vst [vmem:[#allocation3] sm:$0xff] 0.0
    $region21: #{tpu_custom_call.1} parent=1 // pred_fallthru
      _
    %v50 = vld [vmem:[#allocation7] sm:$0xff]
    %v51 = vld [vmem:[#allocation7 + $0x8] sm:$0xff]
    %v52 = vld [vmem:[#allocation7 + $0x10] sm:$0xff]
    %v53 = vld [vmem:[#allocation7 + $0x18] sm:$0xff]
    %v54 = vld [vmem:[#allocation7 + $0x20] sm:$0xff]
    %v55 = vld [vmem:[#allocation7 + $0x28] sm:$0xff]
    %v56 = vld [vmem:[#allocation7 + $0x30] sm:$0xff]
    %v57 = vld [vmem:[#allocation7 + $0x38] sm:$0xff]
    %v58 = vld [vmem:[#allocation7 + $0x40] sm:$0xff]
    %v59 = vld [vmem:[#allocation7 + $0x48] sm:$0xff]
    %v60 = vld [vmem:[#allocation7 + $0x50] sm:$0xff]
    %v61 = vld [vmem:[#allocation7 + $0x58] sm:$0xff]
    %v62 = vld [vmem:[#allocation7 + $0x60] sm:$0xff]
    %v63 = vld [vmem:[#allocation7 + $0x68] sm:$0xff]
    %v64 = vld [vmem:[#allocation7 + $0x70] sm:$0xff]
    %v65 = vld [vmem:[#allocation7 + $0x78] sm:$0xff]
    %v66 = vld [vmem:[#allocation7 + $0x80] sm:$0xff]
    %v67 = vld [vmem:[#allocation7 + $0x88] sm:$0xff]
    %v68 = vld [vmem:[#allocation7 + $0x90] sm:$0xff]
    %v69 = vld [vmem:[#allocation7 + $0x98] sm:$0xff]
    %v70 = vld [vmem:[#allocation7 + $0xa0] sm:$0xff]
    %v71 = vld [vmem:[#allocation7 + $0xa8] sm:$0xff]
    %v72 = vld [vmem:[#allocation7 + $0xb0] sm:$0xff]
    %v73 = vld [vmem:[#allocation7 + $0xb8] sm:$0xff]
    %v74 = vld [vmem:[#allocation7 + $0xc0] sm:$0xff]
    %v75 = vld [vmem:[#allocation7 + $0xc8] sm:$0xff]
    %v76 = vld [vmem:[#allocation7 + $0xd0] sm:$0xff]
    %v77 = vld [vmem:[#allocation7 + $0xd8] sm:$0xff]
    %v78 = vld [vmem:[#allocation7 + $0xe0] sm:$0xff]
    %v79 = vld [vmem:[#allocation7 + $0xe8] sm:$0xff]
    %v80 = vld [vmem:[#allocation7 + $0xf0] sm:$0xff]
    %v81 = vld [vmem:[#allocation7 + $0xf8] sm:$0xff]
    %v82 = vld [vmem:[#allocation7 + $0x100] sm:$0xff]
    %v83 = vld [vmem:[#allocation7 + $0x108] sm:$0xff]
    %v84 = vld [vmem:[#allocation7 + $0x110] sm:$0xff]
    %v85 = vld [vmem:[#allocation7 + $0x118] sm:$0xff]
    %v86 = vld [vmem:[#allocation7 + $0x120] sm:$0xff]
    %v87 = vld [vmem:[#allocation7 + $0x128] sm:$0xff]
    %v88 = vld [vmem:[#allocation7 + $0x130] sm:$0xff]
    %v89 = vld [vmem:[#allocation7 + $0x138] sm:$0xff]
    %v90 = vld [vmem:[#allocation7 + $0x140] sm:$0xff]
    %v91 = vld [vmem:[#allocation7 + $0x148] sm:$0xff]
    %v92 = vld [vmem:[#allocation7 + $0x150] sm:$0xff]
    %v93 = vld [vmem:[#allocation7 + $0x158] sm:$0xff]
    %v94 = vld [vmem:[#allocation7 + $0x160] sm:$0xff]
    %v95 = vld [vmem:[#allocation7 + $0x168] sm:$0xff]
    %v96 = vld [vmem:[#allocation7 + $0x170] sm:$0xff]
    %v97 = vld [vmem:[#allocation7 + $0x178] sm:$0xff]
    %v98 = vld [vmem:[#allocation7 + $0x180] sm:$0xff]
    %v99 = vld [vmem:[#allocation7 + $0x188] sm:$0xff]
    %v100 = vld [vmem:[#allocation7 + $0x190] sm:$0xff]
    %v101 = vld [vmem:[#allocation7 + $0x198] sm:$0xff]
    %v102 = vld [vmem:[#allocation7 + $0x1a0] sm:$0xff]
    %v103 = vld [vmem:[#allocation7 + $0x1a8] sm:$0xff]
    %v104 = vld [vmem:[#allocation7 + $0x1b0] sm:$0xff]
    %v105 = vld [vmem:[#allocation7 + $0x1b8] sm:$0xff]
    %v106 = vld [vmem:[#allocation7 + $0x1c0] sm:$0xff]
    %v107 = vld [vmem:[#allocation7 + $0x1c8] sm:$0xff]
    %v108 = vld [vmem:[#allocation7 + $0x1d0] sm:$0xff]
    %v109 = vld [vmem:[#allocation7 + $0x1d8] sm:$0xff]
    %v110 = vld [vmem:[#allocation7 + $0x1e0] sm:$0xff]
    %v111 = vld [vmem:[#allocation7 + $0x1e8] sm:$0xff]
    %v112 = vld [vmem:[#allocation7 + $0x1f0] sm:$0xff]
    %v113 = vld [vmem:[#allocation7 + $0x1f8] sm:$0xff]
    %v114 = vld [vmem:[#allocation2] sm:$0xff]
    %v115 = vld [vmem:[#allocation3] sm:$0xff]
    %v116 = vld [vmem:[#allocation4] sm:$0xff]
    %v117 = vld [vmem:[#allocation4 + $0x8] sm:$0xff]
    %v118 = vld [vmem:[#allocation4 + $0x10] sm:$0xff]
    %v119 = vld [vmem:[#allocation4 + $0x18] sm:$0xff]
    %120 = vmatpush.msra.mxu0 %v110
    %121 = vmatpush.msra.mxu0 %v106
    %122 = vmatpush.msra.mxu0 %v102
    %123 = vmatpush.msra.mxu0 %v98
    %124 = vmatpush.msra.mxu0 %v94
    %125 = vmatpush.msra.mxu0 %v90
    %126 = vmatpush.msra.mxu0 %v86
    %127 = vmatpush.msra.mxu0 %v82
    %128 = vmatpush.msra.mxu0 %v78
    %129 = vmatpush.msra.mxu0 %v74
    %130 = vmatpush.msra.mxu0 %v70
    %131 = vmatpush.msra.mxu0 %v66
    %132 = vmatpush.msra.mxu0 %v62
    %133 = vmatpush.msra.mxu0 %v58
    %134 = vmatpush.msra.mxu0 %v54
    %135 = vmatpush.msra.mxu0 %v50
    %136 = vmatmul.f32.gmra.mxu0 %v114
    %v137 = vpop.f32.mrf.mxu0
    %v138 = vadd.f32 0.0, %v137
    %139 = vdwg.mxu0
    %140 = vmatpush.msra.mxu0 %v111
    %141 = vmatpush.msra.mxu0 %v107
    %142 = vmatpush.msra.mxu0 %v103
    %143 = vmatpush.msra.mxu0 %v99
    %144 = vmatpush.msra.mxu0 %v95
    %145 = vmatpush.msra.mxu0 %v91
    %146 = vmatpush.msra.mxu0 %v87
    %147 = vmatpush.msra.mxu0 %v83
    %148 = vmatpush.msra.mxu0 %v79
    %149 = vmatpush.msra.mxu0 %v75
    %150 = vmatpush.msra.mxu0 %v71
    %151 = vmatpush.msra.mxu0 %v67
    %152 = vmatpush.msra.mxu0 %v63
    %153 = vmatpush.msra.mxu0 %v59
    %154 = vmatpush.msra.mxu0 %v55
    %155 = vmatpush.msra.mxu0 %v51
    %156 = vmatmul.f32.gmra.mxu0 %v114
    %v157 = vpop.f32.mrf.mxu0
    %v158 = vadd.f32 0.0, %v157
    %159 = vdwg.mxu0
    %160 = vmatpush.msra.mxu0 %v112
    %161 = vmatpush.msra.mxu0 %v108
    %162 = vmatpush.msra.mxu0 %v104
    %163 = vmatpush.msra.mxu0 %v100
    %164 = vmatpush.msra.mxu0 %v96
    %165 = vmatpush.msra.mxu0 %v92
    %166 = vmatpush.msra.mxu0 %v88
    %167 = vmatpush.msra.mxu0 %v84
    %168 = vmatpush.msra.mxu0 %v80
    %169 = vmatpush.msra.mxu0 %v76
    %170 = vmatpush.msra.mxu0 %v72
    %171 = vmatpush.msra.mxu0 %v68
    %172 = vmatpush.msra.mxu0 %v64
    %173 = vmatpush.msra.mxu0 %v60
    %174 = vmatpush.msra.mxu0 %v56
    %175 = vmatpush.msra.mxu0 %v52
    %176 = vmatmul.f32.gmra.mxu0 %v114
    %v177 = vpop.f32.mrf.mxu0
    %v178 = vadd.f32 0.0, %v177
    %179 = vdwg.mxu0
    %180 = vmatpush.msra.mxu0 %v113
    %181 = vmatpush.msra.mxu0 %v109
    %182 = vmatpush.msra.mxu0 %v105
    %183 = vmatpush.msra.mxu0 %v101
    %184 = vmatpush.msra.mxu0 %v97
    %185 = vmatpush.msra.mxu0 %v93
    %186 = vmatpush.msra.mxu0 %v89
    %187 = vmatpush.msra.mxu0 %v85
    %188 = vmatpush.msra.mxu0 %v81
    %189 = vmatpush.msra.mxu0 %v77
    %190 = vmatpush.msra.mxu0 %v73
    %191 = vmatpush.msra.mxu0 %v69
    %192 = vmatpush.msra.mxu0 %v65
    %193 = vmatpush.msra.mxu0 %v61
    %194 = vmatpush.msra.mxu0 %v57
    %195 = vmatpush.msra.mxu0 %v53
    %196 = vmatmul.f32.gmra.mxu0 %v114
    %v197 = vpop.f32.mrf.mxu0
    %v198 = vadd.f32 0.0, %v197
    %199 = vdwg.mxu0
    %v200 = vadd.f32 %v116, %v138
    %v201 = vadd.f32 %v117, %v158
    %v202 = vadd.f32 %v118, %v178
    %v203 = vadd.f32 %v119, %v198
    %v204 = vxor.u32 %v200, 2147483648
    %v205 = vmul.f32 %v204, 1.442695
    %v206 = vpow.pop %v205
    %v207 = vadd.f32 %v206, 1.0
    %v208 = vrcp.pop %v207
    %v209 = vmul.f32 %v207, %v208
    %v210 = vsub.f32 1.0, %v209
    %v211 = vmul.f32 %v208, %v210
    %v212 = vadd.f32 %v208, %v211
    %vm213 = vweird.f32 %v207
    %vm214 = vweird.f32 %v208
    %vm215 = vmor %vm213, %vm214
    %v216 = vsel %vm215, %v208, %v212
    %v217 = vand.u32 2147483647, %v207
    %vm218 = vcmp.eq.f32.partialorder %v217, 8.507059e+37
    %v219 = vand.u32 %v207, 2147483648
    %v220 = vor.u32 1.1754944e-38, %v219
    %v221 = vsel %vm218, %v220, %v216
    %v222 = vmul.f32 1.0, %v221
    %v223 = vxor.u32 %v201, 2147483648
    %v224 = vmul.f32 %v223, 1.442695
    %v225 = vpow.pop %v224
    %v226 = vadd.f32 %v225, 1.0
    %v227 = vrcp.pop %v226
    %v228 = vmul.f32 %v226, %v227
    %v229 = vsub.f32 1.0, %v228
    %v230 = vmul.f32 %v227, %v229
    %v231 = vadd.f32 %v227, %v230
    %vm232 = vweird.f32 %v226
    %vm233 = vweird.f32 %v227
    %vm234 = vmor %vm232, %vm233
    %v235 = vsel %vm234, %v227, %v231
    %v236 = vand.u32 2147483647, %v226
    %vm237 = vcmp.eq.f32.partialorder %v236, 8.507059e+37
    %v238 = vand.u32 %v226, 2147483648
    %v239 = vor.u32 1.1754944e-38, %v238
    %v240 = vsel %vm237, %v239, %v235
    %v241 = vmul.f32 1.0, %v240
    %v242 = vtanh.pop %v202
    %v243 = vxor.u32 %v203, 2147483648
    %v244 = vmul.f32 %v243, 1.442695
    %v245 = vpow.pop %v244
    %v246 = vadd.f32 %v245, 1.0
    %v247 = vrcp.pop %v246
    %v248 = vmul.f32 %v246, %v247
    %v249 = vsub.f32 1.0, %v248
    %v250 = vmul.f32 %v247, %v249
    %v251 = vadd.f32 %v247, %v250
    %vm252 = vweird.f32 %v246
    %vm253 = vweird.f32 %v247
    %vm254 = vmor %vm252, %vm253
    %v255 = vsel %vm254, %v247, %v251
    %v256 = vand.u32 2147483647, %v246
    %vm257 = vcmp.eq.f32.partialorder %v256, 8.507059e+37
    %v258 = vand.u32 %v246, 2147483648
    %v259 = vor.u32 1.1754944e-38, %v258
    %v260 = vsel %vm257, %v259, %v255
    %v261 = vmul.f32 1.0, %v260
    %v262 = vmul.f32 %v241, %v115
    %v263 = vmul.f32 %v222, %v242
    %v264 = vadd.f32 %v262, %v263
    %v265 = vtanh.pop %v264
    %v266 = vmul.f32 %v261, %v265
    %267 = vst [vmem:[#allocation9] sm:$0xff] %v266
    %s268 = scalar_lea.vmem [#allocation4], 32
    %v269 = vld [vmem:[%s268] sm:$0xff]
    %v270 = vld [vmem:[%s268 + $0x8] sm:$0xff]
    %v271 = vld [vmem:[%s268 + $0x10] sm:$0xff]
    %v272 = vld [vmem:[%s268 + $0x18] sm:$0xff]
    %273 = vmatpush.msra.mxu0 %v110
    %274 = vmatpush.msra.mxu0 %v106
    %275 = vmatpush.msra.mxu0 %v102
    %276 = vmatpush.msra.mxu0 %v98
    %277 = vmatpush.msra.mxu0 %v94
    %278 = vmatpush.msra.mxu0 %v90
    %279 = vmatpush.msra.mxu0 %v86
    %280 = vmatpush.msra.mxu0 %v82
    %281 = vmatpush.msra.mxu0 %v78
    %282 = vmatpush.msra.mxu0 %v74
    %283 = vmatpush.msra.mxu0 %v70
    %284 = vmatpush.msra.mxu0 %v66
    %285 = vmatpush.msra.mxu0 %v62
    %286 = vmatpush.msra.mxu0 %v58
    %287 = vmatpush.msra.mxu0 %v54
    %288 = vmatpush.msra.mxu0 %v50
    %289 = vmatmul.f32.gmra.mxu0 %v266
    %v290 = vpop.f32.mrf.mxu0
    %v291 = vadd.f32 0.0, %v290
    %292 = vdwg.mxu0
    %293 = vmatpush.msra.mxu0 %v111
    %294 = vmatpush.msra.mxu0 %v107
    %295 = vmatpush.msra.mxu0 %v103
    %296 = vmatpush.msra.mxu0 %v99
    %297 = vmatpush.msra.mxu0 %v95
    %298 = vmatpush.msra.mxu0 %v91
    %299 = vmatpush.msra.mxu0 %v87
    %300 = vmatpush.msra.mxu0 %v83
    %301 = vmatpush.msra.mxu0 %v79
    %302 = vmatpush.msra.mxu0 %v75
    %303 = vmatpush.msra.mxu0 %v71
    %304 = vmatpush.msra.mxu0 %v67
    %305 = vmatpush.msra.mxu0 %v63
    %306 = vmatpush.msra.mxu0 %v59
    %307 = vmatpush.msra.mxu0 %v55
    %308 = vmatpush.msra.mxu0 %v51
    %309 = vmatmul.f32.gmra.mxu0 %v266
    %v310 = vpop.f32.mrf.mxu0
    %v311 = vadd.f32 0.0, %v310
    %312 = vdwg.mxu0
    %313 = vmatpush.msra.mxu0 %v112
    %314 = vmatpush.msra.mxu0 %v108
    %315 = vmatpush.msra.mxu0 %v104
    %316 = vmatpush.msra.mxu0 %v100
    %317 = vmatpush.msra.mxu0 %v96
    %318 = vmatpush.msra.mxu0 %v92
    %319 = vmatpush.msra.mxu0 %v88
    %320 = vmatpush.msra.mxu0 %v84
    %321 = vmatpush.msra.mxu0 %v80
    %322 = vmatpush.msra.mxu0 %v76
    %323 = vmatpush.msra.mxu0 %v72
    %324 = vmatpush.msra.mxu0 %v68
    %325 = vmatpush.msra.mxu0 %v64
    %326 = vmatpush.msra.mxu0 %v60
    %327 = vmatpush.msra.mxu0 %v56
    %328 = vmatpush.msra.mxu0 %v52
    %329 = vmatmul.f32.gmra.mxu0 %v266
    %v330 = vpop.f32.mrf.mxu0
    %v331 = vadd.f32 0.0, %v330
    %332 = vdwg.mxu0
    %333 = vmatpush.msra.mxu0 %v113
    %334 = vmatpush.msra.mxu0 %v109
    %335 = vmatpush.msra.mxu0 %v105
    %336 = vmatpush.msra.mxu0 %v101
    %337 = vmatpush.msra.mxu0 %v97
    %338 = vmatpush.msra.mxu0 %v93
    %339 = vmatpush.msra.mxu0 %v89
    %340 = vmatpush.msra.mxu0 %v85
    %341 = vmatpush.msra.mxu0 %v81
    %342 = vmatpush.msra.mxu0 %v77
    %343 = vmatpush.msra.mxu0 %v73
    %344 = vmatpush.msra.mxu0 %v69
    %345 = vmatpush.msra.mxu0 %v65
    %346 = vmatpush.msra.mxu0 %v61
    %347 = vmatpush.msra.mxu0 %v57
    %348 = vmatpush.msra.mxu0 %v53
    %349 = vmatmul.f32.gmra.mxu0 %v266
    %v350 = vpop.f32.mrf.mxu0
    %v351 = vadd.f32 0.0, %v350
    %352 = vdwg.mxu0
    %v353 = vadd.f32 %v269, %v291
    %v354 = vadd.f32 %v270, %v311
    %v355 = vadd.f32 %v271, %v331
    %v356 = vadd.f32 %v272, %v351
    %v357 = vxor.u32 %v353, 2147483648
    %v358 = vmul.f32 %v357, 1.442695
    %v359 = vpow.pop %v358
    %v360 = vadd.f32 %v359, 1.0
    %v361 = vrcp.pop %v360
    %v362 = vmul.f32 %v360, %v361
    %v363 = vsub.f32 1.0, %v362
    %v364 = vmul.f32 %v361, %v363
    %v365 = vadd.f32 %v361, %v364
    %vm366 = vweird.f32 %v360
    %vm367 = vweird.f32 %v361
    %vm368 = vmor %vm366, %vm367
    %v369 = vsel %vm368, %v361, %v365
    %v370 = vand.u32 2147483647, %v360
    %vm371 = vcmp.eq.f32.partialorder %v370, 8.507059e+37
    %v372 = vand.u32 %v360, 2147483648
    %v373 = vor.u32 1.1754944e-38, %v372
    %v374 = vsel %vm371, %v373, %v369
    %v375 = vmul.f32 1.0, %v374
    %v376 = vxor.u32 %v354, 2147483648
    %v377 = vmul.f32 %v376, 1.442695
    %v378 = vpow.pop %v377
    %v379 = vadd.f32 %v378, 1.0
    %v380 = vrcp.pop %v379
    %v381 = vmul.f32 %v379, %v380
    %v382 = vsub.f32 1.0, %v381
    %v383 = vmul.f32 %v380, %v382
    %v384 = vadd.f32 %v380, %v383
    %vm385 = vweird.f32 %v379
    %vm386 = vweird.f32 %v380
    %vm387 = vmor %vm385, %vm386
    %v388 = vsel %vm387, %v380, %v384
    %v389 = vand.u32 2147483647, %v379
    %vm390 = vcmp.eq.f32.partialorder %v389, 8.507059e+37
    %v391 = vand.u32 %v379, 2147483648
    %v392 = vor.u32 1.1754944e-38, %v391
    %v393 = vsel %vm390, %v392, %v388
    %v394 = vmul.f32 1.0, %v393
    %v395 = vtanh.pop %v355
    %v396 = vxor.u32 %v356, 2147483648
    %v397 = vmul.f32 %v396, 1.442695
    %v398 = vpow.pop %v397
    %v399 = vadd.f32 %v398, 1.0
    %v400 = vrcp.pop %v399
    %v401 = vmul.f32 %v399, %v400
    %v402 = vsub.f32 1.0, %v401
    %v403 = vmul.f32 %v400, %v402
    %v404 = vadd.f32 %v400, %v403
    %vm405 = vweird.f32 %v399
    %vm406 = vweird.f32 %v400
    %vm407 = vmor %vm405, %vm406
    %v408 = vsel %vm407, %v400, %v404
    %v409 = vand.u32 2147483647, %v399
    %vm410 = vcmp.eq.f32.partialorder %v409, 8.507059e+37
    %v411 = vand.u32 %v399, 2147483648
    %v412 = vor.u32 1.1754944e-38, %v411
    %v413 = vsel %vm410, %v412, %v408
    %v414 = vmul.f32 1.0, %v413
    %v415 = vmul.f32 %v394, %v264
    %v416 = vmul.f32 %v375, %v395
    %v417 = vadd.f32 %v415, %v416
    %v418 = vtanh.pop %v417
    %v419 = vmul.f32 %v414, %v418
    %s420 = scalar_lea.vmem [#allocation9], 8
    %421 = vst [vmem:[%s420] sm:$0xff] %v419
    %s422 = scalar_lea.vmem [#allocation4], 64
    %v423 = vld [vmem:[%s422] sm:$0xff]
    %v424 = vld [vmem:[%s422 + $0x8] sm:$0xff]
    %v425 = vld [vmem:[%s422 + $0x10] sm:$0xff]
    %v426 = vld [vmem:[%s422 + $0x18] sm:$0xff]
    %427 = vmatpush.msra.mxu0 %v110
    %428 = vmatpush.msra.mxu0 %v106
    %429 = vmatpush.msra.mxu0 %v102
    %430 = vmatpush.msra.mxu0 %v98
    %431 = vmatpush.msra.mxu0 %v94
    %432 = vmatpush.msra.mxu0 %v90
    %433 = vmatpush.msra.mxu0 %v86
    %434 = vmatpush.msra.mxu0 %v82
    %435 = vmatpush.msra.mxu0 %v78
    %436 = vmatpush.msra.mxu0 %v74
    %437 = vmatpush.msra.mxu0 %v70
    %438 = vmatpush.msra.mxu0 %v66
    %439 = vmatpush.msra.mxu0 %v62
    %440 = vmatpush.msra.mxu0 %v58
    %441 = vmatpush.msra.mxu0 %v54
    %442 = vmatpush.msra.mxu0 %v50
    %443 = vmatmul.f32.gmra.mxu0 %v419
    %v444 = vpop.f32.mrf.mxu0
    %v445 = vadd.f32 0.0, %v444
    %446 = vdwg.mxu0
    %447 = vmatpush.msra.mxu0 %v111
    %448 = vmatpush.msra.mxu0 %v107
    %449 = vmatpush.msra.mxu0 %v103
    %450 = vmatpush.msra.mxu0 %v99
    %451 = vmatpush.msra.mxu0 %v95
    %452 = vmatpush.msra.mxu0 %v91
    %453 = vmatpush.msra.mxu0 %v87
    %454 = vmatpush.msra.mxu0 %v83
    %455 = vmatpush.msra.mxu0 %v79
    %456 = vmatpush.msra.mxu0 %v75
    %457 = vmatpush.msra.mxu0 %v71
    %458 = vmatpush.msra.mxu0 %v67
    %459 = vmatpush.msra.mxu0 %v63
    %460 = vmatpush.msra.mxu0 %v59
    %461 = vmatpush.msra.mxu0 %v55
    %462 = vmatpush.msra.mxu0 %v51
    %463 = vmatmul.f32.gmra.mxu0 %v419
    %v464 = vpop.f32.mrf.mxu0
    %v465 = vadd.f32 0.0, %v464
    %466 = vdwg.mxu0
    %467 = vmatpush.msra.mxu0 %v112
    %468 = vmatpush.msra.mxu0 %v108
    %469 = vmatpush.msra.mxu0 %v104
    %470 = vmatpush.msra.mxu0 %v100
    %471 = vmatpush.msra.mxu0 %v96
    %472 = vmatpush.msra.mxu0 %v92
    %473 = vmatpush.msra.mxu0 %v88
    %474 = vmatpush.msra.mxu0 %v84
    %475 = vmatpush.msra.mxu0 %v80
    %476 = vmatpush.msra.mxu0 %v76
    %477 = vmatpush.msra.mxu0 %v72
    %478 = vmatpush.msra.mxu0 %v68
    %479 = vmatpush.msra.mxu0 %v64
    %480 = vmatpush.msra.mxu0 %v60
    %481 = vmatpush.msra.mxu0 %v56
    %482 = vmatpush.msra.mxu0 %v52
    %483 = vmatmul.f32.gmra.mxu0 %v419
    %v484 = vpop.f32.mrf.mxu0
    %v485 = vadd.f32 0.0, %v484
    %486 = vdwg.mxu0
    %487 = vmatpush.msra.mxu0 %v113
    %488 = vmatpush.msra.mxu0 %v109
    %489 = vmatpush.msra.mxu0 %v105
    %490 = vmatpush.msra.mxu0 %v101
    %491 = vmatpush.msra.mxu0 %v97
    %492 = vmatpush.msra.mxu0 %v93
    %493 = vmatpush.msra.mxu0 %v89
    %494 = vmatpush.msra.mxu0 %v85
    %495 = vmatpush.msra.mxu0 %v81
    %496 = vmatpush.msra.mxu0 %v77
    %497 = vmatpush.msra.mxu0 %v73
    %498 = vmatpush.msra.mxu0 %v69
    %499 = vmatpush.msra.mxu0 %v65
    %500 = vmatpush.msra.mxu0 %v61
    %501 = vmatpush.msra.mxu0 %v57
    %502 = vmatpush.msra.mxu0 %v53
    %503 = vmatmul.f32.gmra.mxu0 %v419
    %v504 = vpop.f32.mrf.mxu0
    %v505 = vadd.f32 0.0, %v504
    %506 = vdwg.mxu0
    %v507 = vadd.f32 %v423, %v445
    %v508 = vadd.f32 %v424, %v465
    %v509 = vadd.f32 %v425, %v485
    %v510 = vadd.f32 %v426, %v505
    %v511 = vxor.u32 %v507, 2147483648
    %v512 = vmul.f32 %v511, 1.442695
    %v513 = vpow.pop %v512
    %v514 = vadd.f32 %v513, 1.0
    %v515 = vrcp.pop %v514
    %v516 = vmul.f32 %v514, %v515
    %v517 = vsub.f32 1.0, %v516
    %v518 = vmul.f32 %v515, %v517
    %v519 = vadd.f32 %v515, %v518
    %vm520 = vweird.f32 %v514
    %vm521 = vweird.f32 %v515
    %vm522 = vmor %vm520, %vm521
    %v523 = vsel %vm522, %v515, %v519
    %v524 = vand.u32 2147483647, %v514
    %vm525 = vcmp.eq.f32.partialorder %v524, 8.507059e+37
    %v526 = vand.u32 %v514, 2147483648
    %v527 = vor.u32 1.1754944e-38, %v526
    %v528 = vsel %vm525, %v527, %v523
    %v529 = vmul.f32 1.0, %v528
    %v530 = vxor.u32 %v508, 2147483648
    %v531 = vmul.f32 %v530, 1.442695
    %v532 = vpow.pop %v531
    %v533 = vadd.f32 %v532, 1.0
    %v534 = vrcp.pop %v533
    %v535 = vmul.f32 %v533, %v534
    %v536 = vsub.f32 1.0, %v535
    %v537 = vmul.f32 %v534, %v536
    %v538 = vadd.f32 %v534, %v537
    %vm539 = vweird.f32 %v533
    %vm540 = vweird.f32 %v534
    %vm541 = vmor %vm539, %vm540
    %v542 = vsel %vm541, %v534, %v538
    %v543 = vand.u32 2147483647, %v533
    %vm544 = vcmp.eq.f32.partialorder %v543, 8.507059e+37
    %v545 = vand.u32 %v533, 2147483648
    %v546 = vor.u32 1.1754944e-38, %v545
    %v547 = vsel %vm544, %v546, %v542
    %v548 = vmul.f32 1.0, %v547
    %v549 = vtanh.pop %v509
    %v550 = vxor.u32 %v510, 2147483648
    %v551 = vmul.f32 %v550, 1.442695
    %v552 = vpow.pop %v551
    %v553 = vadd.f32 %v552, 1.0
    %v554 = vrcp.pop %v553
    %v555 = vmul.f32 %v553, %v554
    %v556 = vsub.f32 1.0, %v555
    %v557 = vmul.f32 %v554, %v556
    %v558 = vadd.f32 %v554, %v557
    %vm559 = vweird.f32 %v553
    %vm560 = vweird.f32 %v554
    %vm561 = vmor %vm559, %vm560
    %v562 = vsel %vm561, %v554, %v558
    %v563 = vand.u32 2147483647, %v553
    %vm564 = vcmp.eq.f32.partialorder %v563, 8.507059e+37
    %v565 = vand.u32 %v553, 2147483648
    %v566 = vor.u32 1.1754944e-38, %v565
    %v567 = vsel %vm564, %v566, %v562
    %v568 = vmul.f32 1.0, %v567
    %v569 = vmul.f32 %v548, %v417
    %v570 = vmul.f32 %v529, %v549
    %v571 = vadd.f32 %v569, %v570
    %v572 = vtanh.pop %v571
    %v573 = vmul.f32 %v568, %v572
    %s574 = scalar_lea.vmem [#allocation9], 16
    %575 = vst [vmem:[%s574] sm:$0xff] %v573
    %s576 = scalar_lea.vmem [#allocation4], 96
    %v577 = vld [vmem:[%s576] sm:$0xff]
    %v578 = vld [vmem:[%s576 + $0x8] sm:$0xff]
    %v579 = vld [vmem:[%s576 + $0x10] sm:$0xff]
    %v580 = vld [vmem:[%s576 + $0x18] sm:$0xff]
    %581 = vmatpush.msra.mxu0 %v110
    %582 = vmatpush.msra.mxu0 %v106
    %583 = vmatpush.msra.mxu0 %v102
    %584 = vmatpush.msra.mxu0 %v98
    %585 = vmatpush.msra.mxu0 %v94
    %586 = vmatpush.msra.mxu0 %v90
    %587 = vmatpush.msra.mxu0 %v86
    %588 = vmatpush.msra.mxu0 %v82
    %589 = vmatpush.msra.mxu0 %v78
    %590 = vmatpush.msra.mxu0 %v74
    %591 = vmatpush.msra.mxu0 %v70
    %592 = vmatpush.msra.mxu0 %v66
    %593 = vmatpush.msra.mxu0 %v62
    %594 = vmatpush.msra.mxu0 %v58
    %595 = vmatpush.msra.mxu0 %v54
    %596 = vmatpush.msra.mxu0 %v50
    %597 = vmatmul.f32.gmra.mxu0 %v573
    %v598 = vpop.f32.mrf.mxu0
    %v599 = vadd.f32 0.0, %v598
    %600 = vdwg.mxu0
    %601 = vmatpush.msra.mxu0 %v111
    %602 = vmatpush.msra.mxu0 %v107
    %603 = vmatpush.msra.mxu0 %v103
    %604 = vmatpush.msra.mxu0 %v99
    %605 = vmatpush.msra.mxu0 %v95
    %606 = vmatpush.msra.mxu0 %v91
    %607 = vmatpush.msra.mxu0 %v87
    %608 = vmatpush.msra.mxu0 %v83
    %609 = vmatpush.msra.mxu0 %v79
    %610 = vmatpush.msra.mxu0 %v75
    %611 = vmatpush.msra.mxu0 %v71
    %612 = vmatpush.msra.mxu0 %v67
    %613 = vmatpush.msra.mxu0 %v63
    %614 = vmatpush.msra.mxu0 %v59
    %615 = vmatpush.msra.mxu0 %v55
    %616 = vmatpush.msra.mxu0 %v51
    %617 = vmatmul.f32.gmra.mxu0 %v573
    %v618 = vpop.f32.mrf.mxu0
    %v619 = vadd.f32 0.0, %v618
    %620 = vdwg.mxu0
    %621 = vmatpush.msra.mxu0 %v112
    %622 = vmatpush.msra.mxu0 %v108
    %623 = vmatpush.msra.mxu0 %v104
    %624 = vmatpush.msra.mxu0 %v100
    %625 = vmatpush.msra.mxu0 %v96
    %626 = vmatpush.msra.mxu0 %v92
    %627 = vmatpush.msra.mxu0 %v88
    %628 = vmatpush.msra.mxu0 %v84
    %629 = vmatpush.msra.mxu0 %v80
    %630 = vmatpush.msra.mxu0 %v76
    %631 = vmatpush.msra.mxu0 %v72
    %632 = vmatpush.msra.mxu0 %v68
    %633 = vmatpush.msra.mxu0 %v64
    %634 = vmatpush.msra.mxu0 %v60
    %635 = vmatpush.msra.mxu0 %v56
    %636 = vmatpush.msra.mxu0 %v52
    %637 = vmatmul.f32.gmra.mxu0 %v573
    %v638 = vpop.f32.mrf.mxu0
    %v639 = vadd.f32 0.0, %v638
    %640 = vdwg.mxu0
    %641 = vmatpush.msra.mxu0 %v113
    %642 = vmatpush.msra.mxu0 %v109
    %643 = vmatpush.msra.mxu0 %v105
    %644 = vmatpush.msra.mxu0 %v101
    %645 = vmatpush.msra.mxu0 %v97
    %646 = vmatpush.msra.mxu0 %v93
    %647 = vmatpush.msra.mxu0 %v89
    %648 = vmatpush.msra.mxu0 %v85
    %649 = vmatpush.msra.mxu0 %v81
    %650 = vmatpush.msra.mxu0 %v77
    %651 = vmatpush.msra.mxu0 %v73
    %652 = vmatpush.msra.mxu0 %v69
    %653 = vmatpush.msra.mxu0 %v65
    %654 = vmatpush.msra.mxu0 %v61
    %655 = vmatpush.msra.mxu0 %v57
    %656 = vmatpush.msra.mxu0 %v53
    %657 = vmatmul.f32.gmra.mxu0 %v573
    %v658 = vpop.f32.mrf.mxu0
    %v659 = vadd.f32 0.0, %v658
    %660 = vdwg.mxu0
    %v661 = vadd.f32 %v577, %v599
    %v662 = vadd.f32 %v578, %v619
    %v663 = vadd.f32 %v579, %v639
    %v664 = vadd.f32 %v580, %v659
    %v665 = vxor.u32 %v661, 2147483648
    %v666 = vmul.f32 %v665, 1.442695
    %v667 = vpow.pop %v666
    %v668 = vadd.f32 %v667, 1.0
    %v669 = vrcp.pop %v668
    %v670 = vmul.f32 %v668, %v669
    %v671 = vsub.f32 1.0, %v670
    %v672 = vmul.f32 %v669, %v671
    %v673 = vadd.f32 %v669, %v672
    %vm674 = vweird.f32 %v668
    %vm675 = vweird.f32 %v669
    %vm676 = vmor %vm674, %vm675
    %v677 = vsel %vm676, %v669, %v673
    %v678 = vand.u32 2147483647, %v668
    %vm679 = vcmp.eq.f32.partialorder %v678, 8.507059e+37
    %v680 = vand.u32 %v668, 2147483648
    %v681 = vor.u32 1.1754944e-38, %v680
    %v682 = vsel %vm679, %v681, %v677
    %v683 = vmul.f32 1.0, %v682
    %v684 = vxor.u32 %v662, 2147483648
    %v685 = vmul.f32 %v684, 1.442695
    %v686 = vpow.pop %v685
    %v687 = vadd.f32 %v686, 1.0
    %v688 = vrcp.pop %v687
    %v689 = vmul.f32 %v687, %v688
    %v690 = vsub.f32 1.0, %v689
    %v691 = vmul.f32 %v688, %v690
    %v692 = vadd.f32 %v688, %v691
    %vm693 = vweird.f32 %v687
    %vm694 = vweird.f32 %v688
    %vm695 = vmor %vm693, %vm694
    %v696 = vsel %vm695, %v688, %v692
    %v697 = vand.u32 2147483647, %v687
    %vm698 = vcmp.eq.f32.partialorder %v697, 8.507059e+37
    %v699 = vand.u32 %v687, 2147483648
    %v700 = vor.u32 1.1754944e-38, %v699
    %v701 = vsel %vm698, %v700, %v696
    %v702 = vmul.f32 1.0, %v701
    %v703 = vtanh.pop %v663
    %v704 = vxor.u32 %v664, 2147483648
    %v705 = vmul.f32 %v704, 1.442695
    %v706 = vpow.pop %v705
    %v707 = vadd.f32 %v706, 1.0
    %v708 = vrcp.pop %v707
    %v709 = vmul.f32 %v707, %v708
    %v710 = vsub.f32 1.0, %v709
    %v711 = vmul.f32 %v708, %v710
    %v712 = vadd.f32 %v708, %v711
    %vm713 = vweird.f32 %v707
    %vm714 = vweird.f32 %v708
    %vm715 = vmor %vm713, %vm714
    %v716 = vsel %vm715, %v708, %v712
    %v717 = vand.u32 2147483647, %v707
    %vm718 = vcmp.eq.f32.partialorder %v717, 8.507059e+37
    %v719 = vand.u32 %v707, 2147483648
    %v720 = vor.u32 1.1754944e-38, %v719
    %v721 = vsel %vm718, %v720, %v716
    %v722 = vmul.f32 1.0, %v721
    %v723 = vmul.f32 %v702, %v571
    %v724 = vmul.f32 %v683, %v703
    %v725 = vadd.f32 %v723, %v724
    %v726 = vtanh.pop %v725
    %v727 = vmul.f32 %v722, %v726
    %s728 = scalar_lea.vmem [#allocation9], 24
    %729 = vst [vmem:[%s728] sm:$0xff] %v727
    %s730 = scalar_lea.vmem [#allocation4], 128
    %v731 = vld [vmem:[%s730] sm:$0xff]
    %v732 = vld [vmem:[%s730 + $0x8] sm:$0xff]
    %v733 = vld [vmem:[%s730 + $0x10] sm:$0xff]
    %v734 = vld [vmem:[%s730 + $0x18] sm:$0xff]
    %735 = vmatpush.msra.mxu0 %v110
    %736 = vmatpush.msra.mxu0 %v106
    %737 = vmatpush.msra.mxu0 %v102
    %738 = vmatpush.msra.mxu0 %v98
    %739 = vmatpush.msra.mxu0 %v94
    %740 = vmatpush.msra.mxu0 %v90
    %741 = vmatpush.msra.mxu0 %v86
    %742 = vmatpush.msra.mxu0 %v82
    %743 = vmatpush.msra.mxu0 %v78
    %744 = vmatpush.msra.mxu0 %v74
    %745 = vmatpush.msra.mxu0 %v70
    %746 = vmatpush.msra.mxu0 %v66
    %747 = vmatpush.msra.mxu0 %v62
    %748 = vmatpush.msra.mxu0 %v58
    %749 = vmatpush.msra.mxu0 %v54
    %750 = vmatpush.msra.mxu0 %v50
    %751 = vmatmul.f32.gmra.mxu0 %v727
    %v752 = vpop.f32.mrf.mxu0
    %v753 = vadd.f32 0.0, %v752
    %754 = vdwg.mxu0
    %755 = vmatpush.msra.mxu0 %v111
    %756 = vmatpush.msra.mxu0 %v107
    %757 = vmatpush.msra.mxu0 %v103
    %758 = vmatpush.msra.mxu0 %v99
    %759 = vmatpush.msra.mxu0 %v95
    %760 = vmatpush.msra.mxu0 %v91
    %761 = vmatpush.msra.mxu0 %v87
    %762 = vmatpush.msra.mxu0 %v83
    %763 = vmatpush.msra.mxu0 %v79
    %764 = vmatpush.msra.mxu0 %v75
    %765 = vmatpush.msra.mxu0 %v71
    %766 = vmatpush.msra.mxu0 %v67
    %767 = vmatpush.msra.mxu0 %v63
    %768 = vmatpush.msra.mxu0 %v59
    %769 = vmatpush.msra.mxu0 %v55
    %770 = vmatpush.msra.mxu0 %v51
    %771 = vmatmul.f32.gmra.mxu0 %v727
    %v772 = vpop.f32.mrf.mxu0
    %v773 = vadd.f32 0.0, %v772
    %774 = vdwg.mxu0
    %775 = vmatpush.msra.mxu0 %v112
    %776 = vmatpush.msra.mxu0 %v108
    %777 = vmatpush.msra.mxu0 %v104
    %778 = vmatpush.msra.mxu0 %v100
    %779 = vmatpush.msra.mxu0 %v96
    %780 = vmatpush.msra.mxu0 %v92
    %781 = vmatpush.msra.mxu0 %v88
    %782 = vmatpush.msra.mxu0 %v84
    %783 = vmatpush.msra.mxu0 %v80
    %784 = vmatpush.msra.mxu0 %v76
    %785 = vmatpush.msra.mxu0 %v72
    %786 = vmatpush.msra.mxu0 %v68
    %787 = vmatpush.msra.mxu0 %v64
    %788 = vmatpush.msra.mxu0 %v60
    %789 = vmatpush.msra.mxu0 %v56
    %790 = vmatpush.msra.mxu0 %v52
    %791 = vmatmul.f32.gmra.mxu0 %v727
    %v792 = vpop.f32.mrf.mxu0
    %v793 = vadd.f32 0.0, %v792
    %794 = vdwg.mxu0
    %795 = vmatpush.msra.mxu0 %v113
    %796 = vmatpush.msra.mxu0 %v109
    %797 = vmatpush.msra.mxu0 %v105
    %798 = vmatpush.msra.mxu0 %v101
    %799 = vmatpush.msra.mxu0 %v97
    %800 = vmatpush.msra.mxu0 %v93
    %801 = vmatpush.msra.mxu0 %v89
    %802 = vmatpush.msra.mxu0 %v85
    %803 = vmatpush.msra.mxu0 %v81
    %804 = vmatpush.msra.mxu0 %v77
    %805 = vmatpush.msra.mxu0 %v73
    %806 = vmatpush.msra.mxu0 %v69
    %807 = vmatpush.msra.mxu0 %v65
    %808 = vmatpush.msra.mxu0 %v61
    %809 = vmatpush.msra.mxu0 %v57
    %810 = vmatpush.msra.mxu0 %v53
    %811 = vmatmul.f32.gmra.mxu0 %v727
    %v812 = vpop.f32.mrf.mxu0
    %v813 = vadd.f32 0.0, %v812
    %814 = vdwg.mxu0
    %v815 = vadd.f32 %v731, %v753
    %v816 = vadd.f32 %v732, %v773
    %v817 = vadd.f32 %v733, %v793
    %v818 = vadd.f32 %v734, %v813
    %v819 = vxor.u32 %v815, 2147483648
    %v820 = vmul.f32 %v819, 1.442695
    %v821 = vpow.pop %v820
    %v822 = vadd.f32 %v821, 1.0
    %v823 = vrcp.pop %v822
    %v824 = vmul.f32 %v822, %v823
    %v825 = vsub.f32 1.0, %v824
    %v826 = vmul.f32 %v823, %v825
    %v827 = vadd.f32 %v823, %v826
    %vm828 = vweird.f32 %v822
    %vm829 = vweird.f32 %v823
    %vm830 = vmor %vm828, %vm829
    %v831 = vsel %vm830, %v823, %v827
    %v832 = vand.u32 2147483647, %v822
    %vm833 = vcmp.eq.f32.partialorder %v832, 8.507059e+37
    %v834 = vand.u32 %v822, 2147483648
    %v835 = vor.u32 1.1754944e-38, %v834
    %v836 = vsel %vm833, %v835, %v831
    %v837 = vmul.f32 1.0, %v836
    %v838 = vxor.u32 %v816, 2147483648
    %v839 = vmul.f32 %v838, 1.442695
    %v840 = vpow.pop %v839
    %v841 = vadd.f32 %v840, 1.0
    %v842 = vrcp.pop %v841
    %v843 = vmul.f32 %v841, %v842
    %v844 = vsub.f32 1.0, %v843
    %v845 = vmul.f32 %v842, %v844
    %v846 = vadd.f32 %v842, %v845
    %vm847 = vweird.f32 %v841
    %vm848 = vweird.f32 %v842
    %vm849 = vmor %vm847, %vm848
    %v850 = vsel %vm849, %v842, %v846
    %v851 = vand.u32 2147483647, %v841
    %vm852 = vcmp.eq.f32.partialorder %v851, 8.507059e+37
    %v853 = vand.u32 %v841, 2147483648
    %v854 = vor.u32 1.1754944e-38, %v853
    %v855 = vsel %vm852, %v854, %v850
    %v856 = vmul.f32 1.0, %v855
    %v857 = vtanh.pop %v817
    %v858 = vxor.u32 %v818, 2147483648
    %v859 = vmul.f32 %v858, 1.442695
    %v860 = vpow.pop %v859
    %v861 = vadd.f32 %v860, 1.0
    %v862 = vrcp.pop %v861
    %v863 = vmul.f32 %v861, %v862
    %v864 = vsub.f32 1.0, %v863
    %v865 = vmul.f32 %v862, %v864
    %v866 = vadd.f32 %v862, %v865
    %vm867 = vweird.f32 %v861
    %vm868 = vweird.f32 %v862
    %vm869 = vmor %vm867, %vm868
    %v870 = vsel %vm869, %v862, %v866
    %v871 = vand.u32 2147483647, %v861
    %vm872 = vcmp.eq.f32.partialorder %v871, 8.507059e+37
    %v873 = vand.u32 %v861, 2147483648
    %v874 = vor.u32 1.1754944e-38, %v873
    %v875 = vsel %vm872, %v874, %v870
    %v876 = vmul.f32 1.0, %v875
    %v877 = vmul.f32 %v856, %v725
    %v878 = vmul.f32 %v837, %v857
    %v879 = vadd.f32 %v877, %v878
    %v880 = vtanh.pop %v879
    %v881 = vmul.f32 %v876, %v880
    %s882 = scalar_lea.vmem [#allocation9], 32
    %883 = vst [vmem:[%s882] sm:$0xff] %v881
    %s884 = scalar_lea.vmem [#allocation4], 160
    %v885 = vld [vmem:[%s884] sm:$0xff]
    %v886 = vld [vmem:[%s884 + $0x8] sm:$0xff]
    %v887 = vld [vmem:[%s884 + $0x10] sm:$0xff]
    %v888 = vld [vmem:[%s884 + $0x18] sm:$0xff]
    %889 = vmatpush.msra.mxu0 %v110
    %890 = vmatpush.msra.mxu0 %v106
    %891 = vmatpush.msra.mxu0 %v102
    %892 = vmatpush.msra.mxu0 %v98
    %893 = vmatpush.msra.mxu0 %v94
    %894 = vmatpush.msra.mxu0 %v90
    %895 = vmatpush.msra.mxu0 %v86
    %896 = vmatpush.msra.mxu0 %v82
    %897 = vmatpush.msra.mxu0 %v78
    %898 = vmatpush.msra.mxu0 %v74
    %899 = vmatpush.msra.mxu0 %v70
    %900 = vmatpush.msra.mxu0 %v66
    %901 = vmatpush.msra.mxu0 %v62
    %902 = vmatpush.msra.mxu0 %v58
    %903 = vmatpush.msra.mxu0 %v54
    %904 = vmatpush.msra.mxu0 %v50
    %905 = vmatmul.f32.gmra.mxu0 %v881
    %v906 = vpop.f32.mrf.mxu0
    %v907 = vadd.f32 0.0, %v906
    %908 = vdwg.mxu0
    %909 = vmatpush.msra.mxu0 %v111
    %910 = vmatpush.msra.mxu0 %v107
    %911 = vmatpush.msra.mxu0 %v103
    %912 = vmatpush.msra.mxu0 %v99
    %913 = vmatpush.msra.mxu0 %v95
    %914 = vmatpush.msra.mxu0 %v91
    %915 = vmatpush.msra.mxu0 %v87
    %916 = vmatpush.msra.mxu0 %v83
    %917 = vmatpush.msra.mxu0 %v79
    %918 = vmatpush.msra.mxu0 %v75
    %919 = vmatpush.msra.mxu0 %v71
    %920 = vmatpush.msra.mxu0 %v67
    %921 = vmatpush.msra.mxu0 %v63
    %922 = vmatpush.msra.mxu0 %v59
    %923 = vmatpush.msra.mxu0 %v55
    %924 = vmatpush.msra.mxu0 %v51
    %925 = vmatmul.f32.gmra.mxu0 %v881
    %v926 = vpop.f32.mrf.mxu0
    %v927 = vadd.f32 0.0, %v926
    %928 = vdwg.mxu0
    %929 = vmatpush.msra.mxu0 %v112
    %930 = vmatpush.msra.mxu0 %v108
    %931 = vmatpush.msra.mxu0 %v104
    %932 = vmatpush.msra.mxu0 %v100
    %933 = vmatpush.msra.mxu0 %v96
    %934 = vmatpush.msra.mxu0 %v92
    %935 = vmatpush.msra.mxu0 %v88
    %936 = vmatpush.msra.mxu0 %v84
    %937 = vmatpush.msra.mxu0 %v80
    %938 = vmatpush.msra.mxu0 %v76
    %939 = vmatpush.msra.mxu0 %v72
    %940 = vmatpush.msra.mxu0 %v68
    %941 = vmatpush.msra.mxu0 %v64
    %942 = vmatpush.msra.mxu0 %v60
    %943 = vmatpush.msra.mxu0 %v56
    %944 = vmatpush.msra.mxu0 %v52
    %945 = vmatmul.f32.gmra.mxu0 %v881
    %v946 = vpop.f32.mrf.mxu0
    %v947 = vadd.f32 0.0, %v946
    %948 = vdwg.mxu0
    %949 = vmatpush.msra.mxu0 %v113
    %950 = vmatpush.msra.mxu0 %v109
    %951 = vmatpush.msra.mxu0 %v105
    %952 = vmatpush.msra.mxu0 %v101
    %953 = vmatpush.msra.mxu0 %v97
    %954 = vmatpush.msra.mxu0 %v93
    %955 = vmatpush.msra.mxu0 %v89
    %956 = vmatpush.msra.mxu0 %v85
    %957 = vmatpush.msra.mxu0 %v81
    %958 = vmatpush.msra.mxu0 %v77
    %959 = vmatpush.msra.mxu0 %v73
    %960 = vmatpush.msra.mxu0 %v69
    %961 = vmatpush.msra.mxu0 %v65
    %962 = vmatpush.msra.mxu0 %v61
    %963 = vmatpush.msra.mxu0 %v57
    %964 = vmatpush.msra.mxu0 %v53
    %965 = vmatmul.f32.gmra.mxu0 %v881
    %v966 = vpop.f32.mrf.mxu0
    %v967 = vadd.f32 0.0, %v966
    %968 = vdwg.mxu0
    %v969 = vadd.f32 %v885, %v907
    %v970 = vadd.f32 %v886, %v927
    %v971 = vadd.f32 %v887, %v947
    %v972 = vadd.f32 %v888, %v967
    %v973 = vxor.u32 %v969, 2147483648
    %v974 = vmul.f32 %v973, 1.442695
    %v975 = vpow.pop %v974
    %v976 = vadd.f32 %v975, 1.0
    %v977 = vrcp.pop %v976
    %v978 = vmul.f32 %v976, %v977
    %v979 = vsub.f32 1.0, %v978
    %v980 = vmul.f32 %v977, %v979
    %v981 = vadd.f32 %v977, %v980
    %vm982 = vweird.f32 %v976
    %vm983 = vweird.f32 %v977
    %vm984 = vmor %vm982, %vm983
    %v985 = vsel %vm984, %v977, %v981
    %v986 = vand.u32 2147483647, %v976
    %vm987 = vcmp.eq.f32.partialorder %v986, 8.507059e+37
    %v988 = vand.u32 %v976, 2147483648
    %v989 = vor.u32 1.1754944e-38, %v988
    %v990 = vsel %vm987, %v989, %v985
    %v991 = vmul.f32 1.0, %v990
    %v992 = vxor.u32 %v970, 2147483648
    %v993 = vmul.f32 %v992, 1.442695
    %v994 = vpow.pop %v993
    %v995 = vadd.f32 %v994, 1.0
    %v996 = vrcp.pop %v995
    %v997 = vmul.f32 %v995, %v996
    %v998 = vsub.f32 1.0, %v997
    %v999 = vmul.f32 %v996, %v998
    %v1000 = vadd.f32 %v996, %v999
    %vm1001 = vweird.f32 %v995
    %vm1002 = vweird.f32 %v996
    %vm1003 = vmor %vm1001, %vm1002
    %v1004 = vsel %vm1003, %v996, %v1000
    %v1005 = vand.u32 2147483647, %v995
    %vm1006 = vcmp.eq.f32.partialorder %v1005, 8.507059e+37
    %v1007 = vand.u32 %v995, 2147483648
    %v1008 = vor.u32 1.1754944e-38, %v1007
    %v1009 = vsel %vm1006, %v1008, %v1004
    %v1010 = vmul.f32 1.0, %v1009
    %v1011 = vtanh.pop %v971
    %v1012 = vxor.u32 %v972, 2147483648
    %v1013 = vmul.f32 %v1012, 1.442695
    %v1014 = vpow.pop %v1013
    %v1015 = vadd.f32 %v1014, 1.0
    %v1016 = vrcp.pop %v1015
    %v1017 = vmul.f32 %v1015, %v1016
    %v1018 = vsub.f32 1.0, %v1017
    %v1019 = vmul.f32 %v1016, %v1018
    %v1020 = vadd.f32 %v1016, %v1019
    %vm1021 = vweird.f32 %v1015
    %vm1022 = vweird.f32 %v1016
    %vm1023 = vmor %vm1021, %vm1022
    %v1024 = vsel %vm1023, %v1016, %v1020
    %v1025 = vand.u32 2147483647, %v1015
    %vm1026 = vcmp.eq.f32.partialorder %v1025, 8.507059e+37
    %v1027 = vand.u32 %v1015, 2147483648
    %v1028 = vor.u32 1.1754944e-38, %v1027
    %v1029 = vsel %vm1026, %v1028, %v1024
    %v1030 = vmul.f32 1.0, %v1029
    %v1031 = vmul.f32 %v1010, %v879
    %v1032 = vmul.f32 %v991, %v1011
    %v1033 = vadd.f32 %v1031, %v1032
    %v1034 = vtanh.pop %v1033
    %v1035 = vmul.f32 %v1030, %v1034
    %s1036 = scalar_lea.vmem [#allocation9], 40
    %1037 = vst [vmem:[%s1036] sm:$0xff] %v1035
    %s1038 = scalar_lea.vmem [#allocation4], 192
    %v1039 = vld [vmem:[%s1038] sm:$0xff]
    %v1040 = vld [vmem:[%s1038 + $0x8] sm:$0xff]
    %v1041 = vld [vmem:[%s1038 + $0x10] sm:$0xff]
    %v1042 = vld [vmem:[%s1038 + $0x18] sm:$0xff]
    %1043 = vmatpush.msra.mxu0 %v110
    %1044 = vmatpush.msra.mxu0 %v106
    %1045 = vmatpush.msra.mxu0 %v102
    %1046 = vmatpush.msra.mxu0 %v98
    %1047 = vmatpush.msra.mxu0 %v94
    %1048 = vmatpush.msra.mxu0 %v90
    %1049 = vmatpush.msra.mxu0 %v86
    %1050 = vmatpush.msra.mxu0 %v82
    %1051 = vmatpush.msra.mxu0 %v78
    %1052 = vmatpush.msra.mxu0 %v74
    %1053 = vmatpush.msra.mxu0 %v70
    %1054 = vmatpush.msra.mxu0 %v66
    %1055 = vmatpush.msra.mxu0 %v62
    %1056 = vmatpush.msra.mxu0 %v58
    %1057 = vmatpush.msra.mxu0 %v54
    %1058 = vmatpush.msra.mxu0 %v50
    %1059 = vmatmul.f32.gmra.mxu0 %v1035
    %v1060 = vpop.f32.mrf.mxu0
    %v1061 = vadd.f32 0.0, %v1060
    %1062 = vdwg.mxu0
    %1063 = vmatpush.msra.mxu0 %v111
    %1064 = vmatpush.msra.mxu0 %v107
    %1065 = vmatpush.msra.mxu0 %v103
    %1066 = vmatpush.msra.mxu0 %v99
    %1067 = vmatpush.msra.mxu0 %v95
    %1068 = vmatpush.msra.mxu0 %v91
    %1069 = vmatpush.msra.mxu0 %v87
    %1070 = vmatpush.msra.mxu0 %v83
    %1071 = vmatpush.msra.mxu0 %v79
    %1072 = vmatpush.msra.mxu0 %v75
    %1073 = vmatpush.msra.mxu0 %v71
    %1074 = vmatpush.msra.mxu0 %v67
    %1075 = vmatpush.msra.mxu0 %v63
    %1076 = vmatpush.msra.mxu0 %v59
    %1077 = vmatpush.msra.mxu0 %v55
    %1078 = vmatpush.msra.mxu0 %v51
    %1079 = vmatmul.f32.gmra.mxu0 %v1035
    %v1080 = vpop.f32.mrf.mxu0
    %v1081 = vadd.f32 0.0, %v1080
    %1082 = vdwg.mxu0
    %1083 = vmatpush.msra.mxu0 %v112
    %1084 = vmatpush.msra.mxu0 %v108
    %1085 = vmatpush.msra.mxu0 %v104
    %1086 = vmatpush.msra.mxu0 %v100
    %1087 = vmatpush.msra.mxu0 %v96
    %1088 = vmatpush.msra.mxu0 %v92
    %1089 = vmatpush.msra.mxu0 %v88
    %1090 = vmatpush.msra.mxu0 %v84
    %1091 = vmatpush.msra.mxu0 %v80
    %1092 = vmatpush.msra.mxu0 %v76
    %1093 = vmatpush.msra.mxu0 %v72
    %1094 = vmatpush.msra.mxu0 %v68
    %1095 = vmatpush.msra.mxu0 %v64
    %1096 = vmatpush.msra.mxu0 %v60
    %1097 = vmatpush.msra.mxu0 %v56
    %1098 = vmatpush.msra.mxu0 %v52
    %1099 = vmatmul.f32.gmra.mxu0 %v1035
    %v1100 = vpop.f32.mrf.mxu0
    %v1101 = vadd.f32 0.0, %v1100
    %1102 = vdwg.mxu0
    %1103 = vmatpush.msra.mxu0 %v113
    %1104 = vmatpush.msra.mxu0 %v109
    %1105 = vmatpush.msra.mxu0 %v105
    %1106 = vmatpush.msra.mxu0 %v101
    %1107 = vmatpush.msra.mxu0 %v97
    %1108 = vmatpush.msra.mxu0 %v93
    %1109 = vmatpush.msra.mxu0 %v89
    %1110 = vmatpush.msra.mxu0 %v85
    %1111 = vmatpush.msra.mxu0 %v81
    %1112 = vmatpush.msra.mxu0 %v77
    %1113 = vmatpush.msra.mxu0 %v73
    %1114 = vmatpush.msra.mxu0 %v69
    %1115 = vmatpush.msra.mxu0 %v65
    %1116 = vmatpush.msra.mxu0 %v61
    %1117 = vmatpush.msra.mxu0 %v57
    %1118 = vmatpush.msra.mxu0 %v53
    %1119 = vmatmul.f32.gmra.mxu0 %v1035
    %v1120 = vpop.f32.mrf.mxu0
    %v1121 = vadd.f32 0.0, %v1120
    %1122 = vdwg.mxu0
    %v1123 = vadd.f32 %v1039, %v1061
    %v1124 = vadd.f32 %v1040, %v1081
    %v1125 = vadd.f32 %v1041, %v1101
    %v1126 = vadd.f32 %v1042, %v1121
    %v1127 = vxor.u32 %v1123, 2147483648
    %v1128 = vmul.f32 %v1127, 1.442695
    %v1129 = vpow.pop %v1128
    %v1130 = vadd.f32 %v1129, 1.0
    %v1131 = vrcp.pop %v1130
    %v1132 = vmul.f32 %v1130, %v1131
    %v1133 = vsub.f32 1.0, %v1132
    %v1134 = vmul.f32 %v1131, %v1133
    %v1135 = vadd.f32 %v1131, %v1134
    %vm1136 = vweird.f32 %v1130
    %vm1137 = vweird.f32 %v1131
    %vm1138 = vmor %vm1136, %vm1137
    %v1139 = vsel %vm1138, %v1131, %v1135
    %v1140 = vand.u32 2147483647, %v1130
    %vm1141 = vcmp.eq.f32.partialorder %v1140, 8.507059e+37
    %v1142 = vand.u32 %v1130, 2147483648
    %v1143 = vor.u32 1.1754944e-38, %v1142
    %v1144 = vsel %vm1141, %v1143, %v1139
    %v1145 = vmul.f32 1.0, %v1144
    %v1146 = vxor.u32 %v1124, 2147483648
    %v1147 = vmul.f32 %v1146, 1.442695
    %v1148 = vpow.pop %v1147
    %v1149 = vadd.f32 %v1148, 1.0
    %v1150 = vrcp.pop %v1149
    %v1151 = vmul.f32 %v1149, %v1150
    %v1152 = vsub.f32 1.0, %v1151
    %v1153 = vmul.f32 %v1150, %v1152
    %v1154 = vadd.f32 %v1150, %v1153
    %vm1155 = vweird.f32 %v1149
    %vm1156 = vweird.f32 %v1150
    %vm1157 = vmor %vm1155, %vm1156
    %v1158 = vsel %vm1157, %v1150, %v1154
    %v1159 = vand.u32 2147483647, %v1149
    %vm1160 = vcmp.eq.f32.partialorder %v1159, 8.507059e+37
    %v1161 = vand.u32 %v1149, 2147483648
    %v1162 = vor.u32 1.1754944e-38, %v1161
    %v1163 = vsel %vm1160, %v1162, %v1158
    %v1164 = vmul.f32 1.0, %v1163
    %v1165 = vtanh.pop %v1125
    %v1166 = vxor.u32 %v1126, 2147483648
    %v1167 = vmul.f32 %v1166, 1.442695
    %v1168 = vpow.pop %v1167
    %v1169 = vadd.f32 %v1168, 1.0
    %v1170 = vrcp.pop %v1169
    %v1171 = vmul.f32 %v1169, %v1170
    %v1172 = vsub.f32 1.0, %v1171
    %v1173 = vmul.f32 %v1170, %v1172
    %v1174 = vadd.f32 %v1170, %v1173
    %vm1175 = vweird.f32 %v1169
    %vm1176 = vweird.f32 %v1170
    %vm1177 = vmor %vm1175, %vm1176
    %v1178 = vsel %vm1177, %v1170, %v1174
    %v1179 = vand.u32 2147483647, %v1169
    %vm1180 = vcmp.eq.f32.partialorder %v1179, 8.507059e+37
    %v1181 = vand.u32 %v1169, 2147483648
    %v1182 = vor.u32 1.1754944e-38, %v1181
    %v1183 = vsel %vm1180, %v1182, %v1178
    %v1184 = vmul.f32 1.0, %v1183
    %v1185 = vmul.f32 %v1164, %v1033
    %v1186 = vmul.f32 %v1145, %v1165
    %v1187 = vadd.f32 %v1185, %v1186
    %v1188 = vtanh.pop %v1187
    %v1189 = vmul.f32 %v1184, %v1188
    %s1190 = scalar_lea.vmem [#allocation9], 48
    %1191 = vst [vmem:[%s1190] sm:$0xff] %v1189
    %s1192 = scalar_lea.vmem [#allocation4], 224
    %v1193 = vld [vmem:[%s1192] sm:$0xff]
    %v1194 = vld [vmem:[%s1192 + $0x8] sm:$0xff]
    %v1195 = vld [vmem:[%s1192 + $0x10] sm:$0xff]
    %v1196 = vld [vmem:[%s1192 + $0x18] sm:$0xff]
    %1197 = vmatpush.msra.mxu0 %v110
    %1198 = vmatpush.msra.mxu0 %v106
    %1199 = vmatpush.msra.mxu0 %v102
    %1200 = vmatpush.msra.mxu0 %v98
    %1201 = vmatpush.msra.mxu0 %v94
    %1202 = vmatpush.msra.mxu0 %v90
    %1203 = vmatpush.msra.mxu0 %v86
    %1204 = vmatpush.msra.mxu0 %v82
    %1205 = vmatpush.msra.mxu0 %v78
    %1206 = vmatpush.msra.mxu0 %v74
    %1207 = vmatpush.msra.mxu0 %v70
    %1208 = vmatpush.msra.mxu0 %v66
    %1209 = vmatpush.msra.mxu0 %v62
    %1210 = vmatpush.msra.mxu0 %v58
    %1211 = vmatpush.msra.mxu0 %v54
    %1212 = vmatpush.msra.mxu0 %v50
    %1213 = vmatmul.f32.gmra.mxu0 %v1189
    %v1214 = vpop.f32.mrf.mxu0
    %v1215 = vadd.f32 0.0, %v1214
    %1216 = vdwg.mxu0
    %1217 = vmatpush.msra.mxu0 %v111
    %1218 = vmatpush.msra.mxu0 %v107
    %1219 = vmatpush.msra.mxu0 %v103
    %1220 = vmatpush.msra.mxu0 %v99
    %1221 = vmatpush.msra.mxu0 %v95
    %1222 = vmatpush.msra.mxu0 %v91
    %1223 = vmatpush.msra.mxu0 %v87
    %1224 = vmatpush.msra.mxu0 %v83
    %1225 = vmatpush.msra.mxu0 %v79
    %1226 = vmatpush.msra.mxu0 %v75
    %1227 = vmatpush.msra.mxu0 %v71
    %1228 = vmatpush.msra.mxu0 %v67
    %1229 = vmatpush.msra.mxu0 %v63
    %1230 = vmatpush.msra.mxu0 %v59
    %1231 = vmatpush.msra.mxu0 %v55
    %1232 = vmatpush.msra.mxu0 %v51
    %1233 = vmatmul.f32.gmra.mxu0 %v1189
    %v1234 = vpop.f32.mrf.mxu0
    %v1235 = vadd.f32 0.0, %v1234
    %1236 = vdwg.mxu0
    %1237 = vmatpush.msra.mxu0 %v112
    %1238 = vmatpush.msra.mxu0 %v108
    %1239 = vmatpush.msra.mxu0 %v104
    %1240 = vmatpush.msra.mxu0 %v100
    %1241 = vmatpush.msra.mxu0 %v96
    %1242 = vmatpush.msra.mxu0 %v92
    %1243 = vmatpush.msra.mxu0 %v88
    %1244 = vmatpush.msra.mxu0 %v84
    %1245 = vmatpush.msra.mxu0 %v80
    %1246 = vmatpush.msra.mxu0 %v76
    %1247 = vmatpush.msra.mxu0 %v72
    %1248 = vmatpush.msra.mxu0 %v68
    %1249 = vmatpush.msra.mxu0 %v64
    %1250 = vmatpush.msra.mxu0 %v60
    %1251 = vmatpush.msra.mxu0 %v56
    %1252 = vmatpush.msra.mxu0 %v52
    %1253 = vmatmul.f32.gmra.mxu0 %v1189
    %v1254 = vpop.f32.mrf.mxu0
    %v1255 = vadd.f32 0.0, %v1254
    %1256 = vdwg.mxu0
    %1257 = vmatpush.msra.mxu0 %v113
    %1258 = vmatpush.msra.mxu0 %v109
    %1259 = vmatpush.msra.mxu0 %v105
    %1260 = vmatpush.msra.mxu0 %v101
    %1261 = vmatpush.msra.mxu0 %v97
    %1262 = vmatpush.msra.mxu0 %v93
    %1263 = vmatpush.msra.mxu0 %v89
    %1264 = vmatpush.msra.mxu0 %v85
    %1265 = vmatpush.msra.mxu0 %v81
    %1266 = vmatpush.msra.mxu0 %v77
    %1267 = vmatpush.msra.mxu0 %v73
    %1268 = vmatpush.msra.mxu0 %v69
    %1269 = vmatpush.msra.mxu0 %v65
    %1270 = vmatpush.msra.mxu0 %v61
    %1271 = vmatpush.msra.mxu0 %v57
    %1272 = vmatpush.msra.mxu0 %v53
    %1273 = vmatmul.f32.gmra.mxu0 %v1189
    %v1274 = vpop.f32.mrf.mxu0
    %v1275 = vadd.f32 0.0, %v1274
    %1276 = vdwg.mxu0
    %v1277 = vadd.f32 %v1193, %v1215
    %v1278 = vadd.f32 %v1194, %v1235
    %v1279 = vadd.f32 %v1195, %v1255
    %v1280 = vadd.f32 %v1196, %v1275
    %v1281 = vxor.u32 %v1277, 2147483648
    %v1282 = vmul.f32 %v1281, 1.442695
    %v1283 = vpow.pop %v1282
    %v1284 = vadd.f32 %v1283, 1.0
    %v1285 = vrcp.pop %v1284
    %v1286 = vmul.f32 %v1284, %v1285
    %v1287 = vsub.f32 1.0, %v1286
    %v1288 = vmul.f32 %v1285, %v1287
    %v1289 = vadd.f32 %v1285, %v1288
    %vm1290 = vweird.f32 %v1284
    %vm1291 = vweird.f32 %v1285
    %vm1292 = vmor %vm1290, %vm1291
    %v1293 = vsel %vm1292, %v1285, %v1289
    %v1294 = vand.u32 2147483647, %v1284
    %vm1295 = vcmp.eq.f32.partialorder %v1294, 8.507059e+37
    %v1296 = vand.u32 %v1284, 2147483648
    %v1297 = vor.u32 1.1754944e-38, %v1296
    %v1298 = vsel %vm1295, %v1297, %v1293
    %v1299 = vmul.f32 1.0, %v1298
    %v1300 = vxor.u32 %v1278, 2147483648
    %v1301 = vmul.f32 %v1300, 1.442695
    %v1302 = vpow.pop %v1301
    %v1303 = vadd.f32 %v1302, 1.0
    %v1304 = vrcp.pop %v1303
    %v1305 = vmul.f32 %v1303, %v1304
    %v1306 = vsub.f32 1.0, %v1305
    %v1307 = vmul.f32 %v1304, %v1306
    %v1308 = vadd.f32 %v1304, %v1307
    %vm1309 = vweird.f32 %v1303
    %vm1310 = vweird.f32 %v1304
    %vm1311 = vmor %vm1309, %vm1310
    %v1312 = vsel %vm1311, %v1304, %v1308
    %v1313 = vand.u32 2147483647, %v1303
    %vm1314 = vcmp.eq.f32.partialorder %v1313, 8.507059e+37
    %v1315 = vand.u32 %v1303, 2147483648
    %v1316 = vor.u32 1.1754944e-38, %v1315
    %v1317 = vsel %vm1314, %v1316, %v1312
    %v1318 = vmul.f32 1.0, %v1317
    %v1319 = vtanh.pop %v1279
    %v1320 = vxor.u32 %v1280, 2147483648
    %v1321 = vmul.f32 %v1320, 1.442695
    %v1322 = vpow.pop %v1321
    %v1323 = vadd.f32 %v1322, 1.0
    %v1324 = vrcp.pop %v1323
    %v1325 = vmul.f32 %v1323, %v1324
    %v1326 = vsub.f32 1.0, %v1325
    %v1327 = vmul.f32 %v1324, %v1326
    %v1328 = vadd.f32 %v1324, %v1327
    %vm1329 = vweird.f32 %v1323
    %vm1330 = vweird.f32 %v1324
    %vm1331 = vmor %vm1329, %vm1330
    %v1332 = vsel %vm1331, %v1324, %v1328
    %v1333 = vand.u32 2147483647, %v1323
    %vm1334 = vcmp.eq.f32.partialorder %v1333, 8.507059e+37
    %v1335 = vand.u32 %v1323, 2147483648
    %v1336 = vor.u32 1.1754944e-38, %v1335
    %v1337 = vsel %vm1334, %v1336, %v1332
    %v1338 = vmul.f32 1.0, %v1337
    %v1339 = vmul.f32 %v1318, %v1187
    %v1340 = vmul.f32 %v1299, %v1319
    %v1341 = vadd.f32 %v1339, %v1340
    %v1342 = vtanh.pop %v1341
    %v1343 = vmul.f32 %v1338, %v1342
    %s1344 = scalar_lea.vmem [#allocation9], 56
    %1345 = vst [vmem:[%s1344] sm:$0xff] %v1343
    %1346 = vst [vmem:[#allocation2] sm:$0xff] %v1343
    %1347 = vst [vmem:[#allocation3] sm:$0xff] %v1341
    // Predicated region
    $region22: #{tpu_custom_call.1} parent=1 // pred_check
      _
    $region23: #{tpu_custom_call.1} parent=1 // pred_check_branch
      %1349 = sbr.rel (0) target = $region25
    $region24: #{tpu_custom_call.1} parent=1 // pred_region
      %1351 = vsyncadd [#allocation6], 0
      %s1352 = sshll.u32 [#allocation9], 4
      %s1353 = int_to_ptr.vmem [resolvable:$true] %s1352
      %s1354 = sshll.u32 %s2, 4
      %s1355 = int_to_ptr.hbm [resolvable:$true] %s1354
      %1360 = dma.vmem_to_hbm [thread:$0]  %s1353, 1024, %s1355, [#allocation6], 128, 128, 8
    $region25: #{tpu_custom_call.1} parent=1 // pred_fallthru
      _
    // Predicated region
    $region26: #{tpu_custom_call.1} parent=1 // pred_check
      _
    $region27: #{tpu_custom_call.1} parent=1 // pred_check_branch
      %1362 = sbr.rel (0) target = $region29
    $region28: #{tpu_custom_call.1} parent=1 // pred_region
      %1364 = dma.done [#allocation6], 1024
    $region29: #{tpu_custom_call.1} parent=1 // pred_fallthru
      _
    %1365 = vsyncpa [#allocation5], 1
    %1366 = vsyncpa [#allocation8], 1
    %1367 = vsyncpa [#allocation6], 1

</llo_original>
